<compile_context>
chip_gen: v6e
topology: v6e:2x2x1
jax: 0.10.0
libtpu: 0.0.40
codegen_flags: <defaults>
</compile_context>

<pallas_src>
import functools

import jax
import jax.numpy as jnp
from jax.experimental import pallas as pl
from jax.experimental.pallas import tpu as pltpu


# --------------------------------------------------------------------------- #
# Kernel
# --------------------------------------------------------------------------- #
def _se_kernel(a_ref, x_ref, w1_ref, b1_ref, w2_ref, b2_ref,
               gamma_ref, beta_ref, wout_ref, bout_ref, out_ref,
               *, n_real):
    """One block = gb graphs. a_ref is bf16; weights are bf16; the rest f32."""
    f32, bf16 = jnp.float32, jnp.bfloat16
    eps = 1e-5
    gb, np_rows, dp = x_ref.shape
    m = gb * np_rows
    inv_n = 1.0 / float(gb * n_real)          # BN denominator = real nodes in block

    a = a_ref[...]                            # (gb, Np, Np)  bf16 (DMA'd at half width)
    x2 = x_ref[...].reshape(m, dp)            # (M, Dp)       f32, padded rows/cols = 0

    # Row mask kills padded rows so relu(bias) of padded rows cannot pollute the
    # batch-norm statistics.  Static no-op when there is no row padding.
    if n_real == np_rows:
        row_mask = None
    else:
        rid = jax.lax.broadcasted_iota(jnp.int32, (gb, np_rows, 1), 1)
        row_mask = (rid < n_real).astype(f32).reshape(m, 1)

    def _mask(h):
        return h if row_mask is None else h * row_mask

    # Hoisted once-per-step parameter loads.
    w1, w2, wout = w1_ref[...], w2_ref[...], wout_ref[...]      # bf16
    b1, b2, bout = b1_ref[...], b2_ref[...], bout_ref[...]      # f32 (1, Dp)
    gamma, beta = gamma_ref[...], beta_ref[...]                 # f32 (1, 3Dp)

    def gcn_layer(h, w, b):
        # Dense (M,Dp)@(Dp,Dp) with the graph axis flattened into M (fills the MXU
        # rows), then per-graph A @ (HW); all bf16 operands, f32 accumulation.
        hw = jnp.dot(h.astype(bf16), w, preferred_element_type=f32)          # (M, Dp)
        ahw = jnp.einsum("gij,gjd->gid", a,
                         hw.astype(bf16).reshape(gb, np_rows, dp),
                         preferred_element_type=f32).reshape(m, dp)
        return _mask(jnp.maximum(ahw + b, 0.0))

    # ---- GCN layers: relu(A_norm @ (H W) + b) ------------------------------ #
    h1 = gcn_layer(x2, w1, b1)
    h2 = gcn_layer(h1, w2, b2)

    # ---- concat + BatchNorm1d (training-mode batch stats over all real nodes
    #      of the block), folded into the output projection:
    #        out = (hcat*scale) @ Wout + (beta - mu*scale) @ Wout + bout ------ #
    hcat = jnp.concatenate([x2, h1, h2], axis=-1)                            # (M, 3Dp)
    mu = jnp.sum(hcat, axis=0, keepdims=True) * inv_n                        # (1, 3Dp)
    var = jnp.sum(hcat * hcat, axis=0, keepdims=True) * inv_n - mu * mu      # E[x^2]-mu^2
    scale = jax.lax.rsqrt(var + eps) * gamma                                 # (1, 3Dp)
    shift = beta - mu * scale                                                # (1, 3Dp)

    hs = (hcat * scale).astype(bf16)                                         # single cast
    row = jnp.dot(shift.astype(bf16), wout, preferred_element_type=f32) + bout
    out = jnp.dot(hs, wout, preferred_element_type=f32) + row                # (M, Dp)
    out_ref[...] = out.reshape(gb, np_rows, dp)


# --------------------------------------------------------------------------- #
# Wrapper helpers
# --------------------------------------------------------------------------- #
def _round_up(v, m):
    return (v + m - 1) // m * m


def _pad2(x, rows, cols):
    r, c = x.shape
    return jnp.pad(x, ((0, rows - r), (0, cols - c)))


def _pad_params(params, d, dp):
    """Pad parameters to lane-dense Dp (keeping the [h0|h1|h2] chunk layout) and
    pre-cast the matmul weights to bf16 so they DMA at half width."""
    bf16 = jnp.bfloat16
    p = {
        "w1": _pad2(params["w1"], dp, dp).astype(bf16),
        "w2": _pad2(params["w2"], dp, dp).astype(bf16),
        "b1": _pad2(params["b1"], 1, dp).astype(jnp.float32),
        "b2": _pad2(params["b2"], 1, dp).astype(jnp.float32),
        "bout": _pad2(params["bout"], 1, dp).astype(jnp.float32),
    }
    gamma = params["gamma"].reshape(1, 3, d)
    beta = params["beta"].reshape(1, 3, d)
    p["gamma"] = jnp.pad(gamma, ((0, 0), (0, 0), (0, dp - d))).reshape(1, 3 * dp)
    p["beta"] = jnp.pad(beta, ((0, 0), (0, 0), (0, dp - d))).reshape(1, 3 * dp)
    wout = params["wout"].reshape(3, d, d)
    p["wout"] = (jnp.pad(wout, ((0, 0), (0, dp - d), (0, dp - d)))
                 .reshape(3 * dp, dp).astype(bf16))
    return p


def _block_bytes_estimate(gb, np_rows, dp):
    """Conservative VMEM footprint of one grid step: double-buffered per-step
    blocks, single-buffered shared params, plus live in-kernel temporaries
    (hcat f32 + its bf16 copy, h/hw f32 + bf16 matmul copies)."""
    m = gb * np_rows
    a_in = gb * np_rows * np_rows * 2          # bf16 adjacency
    x_in = m * dp * 4                          # f32 features
    out = m * dp * 4                           # f32 output
    shared = (2 * dp * dp + 3 * dp * dp) * 2 + (3 * dp + 2 * 3 * dp) * 4
    tmp = m * 3 * dp * (4 + 2) + 4 * m * dp * (4 + 2) + m * dp * 4
    return 2 * (a_in + x_in + out) + shared + tmp


def _vmem_budget_bytes():
    """Chip-aware VMEM budget: leave >= 8 MiB headroom below physical VMEM
    (critical on v7x's 64 MiB), never request more than 112 MiB (v5e/v6e)."""
    try:
        cap = int(pltpu.get_tpu_info().vmem_capacity_bytes)
    except Exception:
        cap = 64 * 1024 * 1024                 # conservative: assume v7x
    return min(cap - 8 * 1024 * 1024, 112 * 1024 * 1024)


def _pick_graphs_per_block(num_graphs, np_rows, dp, budget):
    """Largest divisor of G whose per-step block fits the VMEM budget.  Packing
    the whole batch into one step both fills the MXU rows and makes the in-kernel
    BatchNorm use whole-batch statistics (matching PyTorch BatchNorm1d)."""
    for gb in range(num_graphs, 0, -1):
        if num_graphs % gb == 0 and _block_bytes_estimate(gb, np_rows, dp) <= budget:
            return gb
    return 1


# --------------------------------------------------------------------------- #
# Wrapper
# --------------------------------------------------------------------------- #
def structure_extractor(x, a_norm, params, *, embed_dim, graphs_per_block=None):
    """x: (G, N, D) node features, a_norm: (G, N, N) normalized adjacencies.

    Returns the padded, lane-dense (G, Np, Dp) output (slice [:, :N, :D] only if
    a consumer needs the tight shape — avoids an extra XLA copy of the output).
    """
    G, N, D = x.shape
    assert D == embed_dim and a_norm.shape == (G, N, N)

    Np = _round_up(N, 16)          # multiple of 16: bf16 sublane pack for adjacency
    Dp = _round_up(D, 128)         # lane-dense channels -> unmasked vector stores

    # Pre-cast adjacency to bf16 in HBM (half DMA bytes, no in-kernel cast).
    a_p = jnp.pad(a_norm.astype(jnp.bfloat16), ((0, 0), (0, Np - N), (0, Np - N)))
    x_p = jnp.pad(x.astype(jnp.float32), ((0, 0), (0, Np - N), (0, Dp - D)))
    pp = _pad_params(params, D, Dp)

    budget = _vmem_budget_bytes()
    gb = graphs_per_block or _pick_graphs_per_block(G, Np, Dp, budget)
    assert G % gb == 0
    steps = G // gb
    m = gb * Np

    # TODO(synk): when steps > 1 the BatchNorm statistics only cover the gb graphs
    #             of each step; a two-pass (stats then normalize) variant is needed
    #             for exact whole-batch parity.  With gb == G (default when it fits)
    #             the statistics match PyTorch exactly.
    # TODO(synk): very large Np on v7x (64 MiB VMEM) needs row tiling of the A@XW
    #             matmuls (second grid axis / emit_pipeline) instead of whole-graph blocks.

    kernel = functools.partial(_se_kernel, n_real=N)

    block_bytes = _block_bytes_estimate(gb, Np, Dp)
    vmem_limit = int(min(max(block_bytes + block_bytes // 4, 32 * 1024 * 1024), budget))

    # Advisory cost estimate so XLA schedules around the custom call sensibly.
    flops_step = (2 * 2 * m * Dp * Dp              # X@W1, H1@W2
                  + 2 * 2 * gb * Np * Np * Dp      # A@XW1, A@XW2
                  + 2 * m * 3 * Dp * Dp            # fused out-proj
                  + 2 * 3 * Dp * Dp)               # shift row @ Wout
    bytes_step = gb * Np * Np * 2 + 2 * m * Dp * 4
    bytes_shared = (2 * Dp * Dp + 3 * Dp * Dp) * 2 + (6 * Dp + 6 * Dp) * 4
    cost = pl.CostEstimate(flops=steps * flops_step,
                           transcendentals=steps * 3 * Dp,
                           bytes_accessed=steps * bytes_step + bytes_shared)

    def _call(single_buffer_params):
        shared_kwargs = (dict(pipeline_mode=pl.Buffered(1))
                         if single_buffer_params else {})

        def graph_spec(tail):
            return pl.BlockSpec((gb,) + tail, lambda s: (s,) + (0,) * len(tail))

        def shared_spec(shape):
            return pl.BlockSpec(shape, lambda s: (0,) * len(shape), **shared_kwargs)

        return pl.pallas_call(
            kernel,
            out_shape=jax.ShapeDtypeStruct((G, Np, Dp), jnp.float32),
            grid=(steps,),
            in_specs=[
                graph_spec((Np, Np)),        # adjacency (bf16)
                graph_spec((Np, Dp)),        # node features (f32)
                shared_spec((Dp, Dp)),       # W1 (bf16)
                shared_spec((1, Dp)),        # b1
                shared_spec((Dp, Dp)),       # W2 (bf16)
                shared_spec((1, Dp)),        # b2
                shared_spec((1, 3 * Dp)),    # BN gamma
                shared_spec((1, 3 * Dp)),    # BN beta
                shared_spec((3 * Dp, Dp)),   # Wout (bf16)
                shared_spec((1, Dp)),        # bout
            ],
            out_specs=graph_spec((Np, Dp)),
            compiler_params=pltpu.CompilerParams(
                dimension_semantics=("parallel",),
                vmem_limit_bytes=vmem_limit),
            cost_estimate=cost,
        )(a_p, x_p, pp["w1"], pp["b1"], pp["w2"], pp["b2"],
          pp["gamma"], pp["beta"], pp["wout"], pp["bout"])

    try:
        # Constant-index parameter blocks never get re-fetched; a single pipeline
        # buffer avoids wasting VMEM on a dead second copy.
        return _call(True)
    except Exception:
        # Fallback if pipeline_mode / Buffered(1) is unsupported by this JAX.
        return _call(False)


# --------------------------------------------------------------------------- #
# Graph / parameter construction + pure-JAX references
# --------------------------------------------------------------------------- #
def build_norm_adjacency(edge_index, num_nodes):
    """GCNConv-style symmetric normalization: simple graph from edge_index with
    unit self loops (add_remaining_self_loops-like), A_norm = D^-1/2 A D^-1/2."""
    src, dst = edge_index[0], edge_index[1]
    a = jnp.zeros((num_nodes, num_nodes), jnp.float32)
    a = a.at[dst, src].add(1.0)
    a = jnp.minimum(a, 1.0)                                 # de-dup random multi-edges
    a = jnp.maximum(a, jnp.eye(num_nodes, dtype=jnp.float32))   # ensure self loop = 1
    deg = jnp.sum(a, axis=1)
    dinv = jnp.where(deg > 0, jax.lax.rsqrt(deg), 0.0)
    return dinv[:, None] * a * dinv[None, :]


def init_params(key, embed_dim):
    D = embed_dim
    inner = 3 * D  # (num_layers + 1) * embed_dim, num_layers=2, concat=True
    ks = jax.random.split(key, 4)
    scale = 1.0 / jnp.sqrt(jnp.float32(D))
    return {
        "w1":    jax.random.normal(ks[0], (D, D), jnp.float32) * scale,
        "b1":    jnp.zeros((1, D), jnp.float32),
        "w2":    jax.random.normal(ks[1], (D, D), jnp.float32) * scale,
        "b2":    jnp.zeros((1, D), jnp.float32),
        "gamma": jnp.ones((1, inner), jnp.float32),
        "beta":  jnp.zeros((1, inner), jnp.float32),
        "wout":  jax.random.normal(ks[2], (inner, D), jnp.float32)
                 * (1.0 / jnp.sqrt(jnp.float32(inner))),
        "bout":  jax.random.normal(ks[3], (1, D), jnp.float32) * 0.01,
    }


def reference_f32(x, a_norm, params):
    """Textbook f32 reference (PyTorch semantics): 2 GCN layers + ReLU, concat,
    training-mode BatchNorm1d over ALL nodes of ALL graphs, then Linear."""
    f32 = jnp.float32
    G, N, D = x.shape
    h0 = x
    xw1 = jnp.einsum("gnd,de->gne", h0, params["w1"], preferred_element_type=f32)
    h1 = jnp.maximum(jnp.einsum("gij,gjd->gid", a_norm, xw1,
                                preferred_element_type=f32) + params["b1"], 0.0)
    xw2 = jnp.einsum("gnd,de->gne", h1, params["w2"], preferred_element_type=f32)
    h2 = jnp.maximum(jnp.einsum("gij,gjd->gid", a_norm, xw2,
                                preferred_element_type=f32) + params["b2"], 0.0)
    hcat = jnp.concatenate([h0, h1, h2], axis=-1).reshape(G * N, 3 * D)
    mu = jnp.mean(hcat, axis=0, keepdims=True)
    var = jnp.mean((hcat - mu) ** 2, axis=0, keepdims=True)
    hn = (hcat - mu) * jax.lax.rsqrt(var + 1e-5) * params["gamma"] + params["beta"]
    out = jnp.dot(hn, params["wout"], preferred_element_type=f32) + params["bout"]
    return out.reshape(G, N, D)


def reference_mirror(x, a_norm, params):
    """Mirrors the kernel's bf16 operand cast points and folded-BN algebra exactly
    so the comparison isolates kernel bugs from expected bf16 rounding."""
    f32, bf16 = jnp.float32, jnp.bfloat16
    G, N, D = x.shape
    a = a_norm.astype(bf16)
    w1, w2, wout = (params["w1"].astype(bf16), params["w2"].astype(bf16),
                    params["wout"].astype(bf16))

    def gcn_layer(h, w, b):
        hw = jnp.einsum("gnd,de->gne", h.astype(bf16), w, preferred_element_type=f32)
        ahw = jnp.einsum("gij,gjd->gid", a, hw.astype(bf16), preferred_element_type=f32)
        return jnp.maximum(ahw + b, 0.0)

    h1 = gcn_layer(x, w1, params["b1"])
    h2 = gcn_layer(h1, w2, params["b2"])
    hcat = jnp.concatenate([x, h1, h2], axis=-1).reshape(G * N, 3 * D)
    mu = jnp.mean(hcat, axis=0, keepdims=True)
    var = jnp.mean(hcat * hcat, axis=0, keepdims=True) - mu * mu
    scale = jax.lax.rsqrt(var + 1e-5) * params["gamma"]
    shift = params["beta"] - mu * scale
    hs = (hcat * scale).astype(bf16)
    row = jnp.dot(shift.astype(bf16), wout, preferred_element_type=f32) + params["bout"]
    out = jnp.dot(hs, wout, preferred_element_type=f32) + row
    return out.reshape(G, N, D)


# --------------------------------------------------------------------------- #
# Demo / correctness check
# --------------------------------------------------------------------------- #
if __name__ == "__main__":
    embed_dim = 32
    num_nodes = 16
    num_graphs = 2
    num_edges = 40

    key = jax.random.PRNGKey(0)
    k_x, k_e, k_p = jax.random.split(key, 3)

    x = jax.random.normal(k_x, (num_graphs, num_nodes, embed_dim), jnp.float32)
    edge_keys = jax.random.split(k_e, num_graphs)
    a_norm = jnp.stack([
        build_norm_adjacency(
            jax.random.randint(edge_keys[g], (2, num_edges), 0, num_nodes, jnp.int32),
            num_nodes)
        for g in range(num_graphs)
    ])
    params = init_params(k_p, embed_dim)

    out_padded = structure_extractor(x, a_norm, params, embed_dim=embed_dim)
    out_padded = jax.block_until_ready(out_padded)
    Np, Dp = _round_up(num_nodes, 16), _round_up(embed_dim, 128)
    assert out_padded.shape == (num_graphs, Np, Dp)

    out = out_padded[:, :num_nodes, :embed_dim]   # slice only for the check

    ref_m = reference_mirror(x, a_norm, params)
    err_m = float(jnp.max(jnp.abs(out - ref_m)))
    assert err_m < 2e-3, f"max abs err vs cast-mirroring reference: {err_m}"

    ref_f = reference_f32(x, a_norm, params)
    err_f = float(jnp.max(jnp.abs(out - ref_f)))
    assert err_f < 2.5e-1, f"max abs err vs full-f32 reference: {err_f}"

    print("KERNEL_OK")
</pallas_src>

<mosaic_0001>
module attributes {stable_mosaic.version = 11 : i64} {
  func.func @_se_kernel(%arg0: i32, %arg1: memref<2x16x16xbf16, #tpu.memory_space<vmem>>, %arg2: memref<2x16x128xf32, #tpu.memory_space<vmem>>, %arg3: memref<128x128xbf16, #tpu.memory_space<vmem>>, %arg4: memref<1x128xf32, #tpu.memory_space<vmem>>, %arg5: memref<128x128xbf16, #tpu.memory_space<vmem>>, %arg6: memref<1x128xf32, #tpu.memory_space<vmem>>, %arg7: memref<1x384xf32, #tpu.memory_space<vmem>>, %arg8: memref<1x384xf32, #tpu.memory_space<vmem>>, %arg9: memref<384x128xbf16, #tpu.memory_space<vmem>>, %arg10: memref<1x128xf32, #tpu.memory_space<vmem>>, %arg11: memref<2x16x128xf32, #tpu.memory_space<vmem>>) attributes {dimension_semantics = [#tpu.dimension_semantics<parallel>], iteration_bounds = array<i64: 1>, scalar_prefetch = 0 : i64, scratch_operands = 0 : i64, tpu.core_type = #tpu.core_type<tc>, window_params = [{transform_indices = @transform_0, window_bounds = array<i64: 2, 16, 16>}, {transform_indices = @transform_1, window_bounds = array<i64: 2, 16, 128>}, {pipeline_mode = #tpu.pipeline_mode<synchronous>, transform_indices = @transform_2, window_bounds = array<i64: 128, 128>}, {pipeline_mode = #tpu.pipeline_mode<synchronous>, transform_indices = @transform_3, window_bounds = array<i64: 1, 128>}, {pipeline_mode = #tpu.pipeline_mode<synchronous>, transform_indices = @transform_4, window_bounds = array<i64: 128, 128>}, {pipeline_mode = #tpu.pipeline_mode<synchronous>, transform_indices = @transform_5, window_bounds = array<i64: 1, 128>}, {pipeline_mode = #tpu.pipeline_mode<synchronous>, transform_indices = @transform_6, window_bounds = array<i64: 1, 384>}, {pipeline_mode = #tpu.pipeline_mode<synchronous>, transform_indices = @transform_7, window_bounds = array<i64: 1, 384>}, {pipeline_mode = #tpu.pipeline_mode<synchronous>, transform_indices = @transform_8, window_bounds = array<i64: 384, 128>}, {pipeline_mode = #tpu.pipeline_mode<synchronous>, transform_indices = @transform_9, window_bounds = array<i64: 1, 128>}, {transform_indices = @transform_10, window_bounds = array<i64: 2, 16, 128>}]} {
    %c0 = arith.constant 0 : index
    %c0_0 = arith.constant 0 : index
    %c0_1 = arith.constant 0 : index
    %0 = vector.load %arg1[%c0, %c0_0, %c0_1] : memref<2x16x16xbf16, #tpu.memory_space<vmem>>, vector<2x16x16xbf16>
    %c0_2 = arith.constant 0 : index
    %c0_3 = arith.constant 0 : index
    %c0_4 = arith.constant 0 : index
    %1 = vector.load %arg2[%c0_2, %c0_3, %c0_4] : memref<2x16x128xf32, #tpu.memory_space<vmem>>, vector<2x16x128xf32>
    %2 = vector.shape_cast %1 : vector<2x16x128xf32> to vector<32x128xf32>
    %c0_5 = arith.constant 0 : index
    %c0_6 = arith.constant 0 : index
    %3 = vector.load %arg3[%c0_5, %c0_6] : memref<128x128xbf16, #tpu.memory_space<vmem>>, vector<128x128xbf16>
    %c0_7 = arith.constant 0 : index
    %c0_8 = arith.constant 0 : index
    %4 = vector.load %arg5[%c0_7, %c0_8] : memref<128x128xbf16, #tpu.memory_space<vmem>>, vector<128x128xbf16>
    %c0_9 = arith.constant 0 : index
    %c0_10 = arith.constant 0 : index
    %5 = vector.load %arg9[%c0_9, %c0_10] : memref<384x128xbf16, #tpu.memory_space<vmem>>, vector<384x128xbf16>
    %c0_11 = arith.constant 0 : index
    %c0_12 = arith.constant 0 : index
    %6 = vector.load %arg4[%c0_11, %c0_12] : memref<1x128xf32, #tpu.memory_space<vmem>>, vector<1x128xf32>
    %c0_13 = arith.constant 0 : index
    %c0_14 = arith.constant 0 : index
    %7 = vector.load %arg6[%c0_13, %c0_14] : memref<1x128xf32, #tpu.memory_space<vmem>>, vector<1x128xf32>
    %c0_15 = arith.constant 0 : index
    %c0_16 = arith.constant 0 : index
    %8 = vector.load %arg10[%c0_15, %c0_16] : memref<1x128xf32, #tpu.memory_space<vmem>>, vector<1x128xf32>
    %c0_17 = arith.constant 0 : index
    %c0_18 = arith.constant 0 : index
    %9 = vector.load %arg7[%c0_17, %c0_18] : memref<1x384xf32, #tpu.memory_space<vmem>>, vector<1x384xf32>
    %c0_19 = arith.constant 0 : index
    %c0_20 = arith.constant 0 : index
    %10 = vector.load %arg8[%c0_19, %c0_20] : memref<1x384xf32, #tpu.memory_space<vmem>>, vector<1x384xf32>
    %11 = arith.truncf %2 : vector<32x128xf32> to vector<32x128xbf16>
    %cst = arith.constant dense<0.000000e+00> : vector<32x128xf32>
    %12 = tpu.matmul %11, %3, %cst {dimension_numbers = #tpu.dot_dimension_numbers<[1], [0], [0], [1], [0, 0, 1, 1], [], []>} : vector<32x128xbf16>, vector<128x128xbf16>, vector<32x128xf32> -> vector<32x128xf32>
    %13 = arith.truncf %12 : vector<32x128xf32> to vector<32x128xbf16>
    %14 = vector.shape_cast %13 : vector<32x128xbf16> to vector<2x16x128xbf16>
    "tpu.trace_start"() <{level = 10 : i32, message = "gij,gjd->gid"}> : () -> ()
    %cst_21 = arith.constant dense<0.000000e+00> : vector<2x16x128xf32>
    %15 = tpu.matmul %0, %14, %cst_21 {dimension_numbers = #tpu.dot_dimension_numbers<[2], [1], [1], [2], [0, 0, 0, 1, 1, 2], [0], [0]>} : vector<2x16x16xbf16>, vector<2x16x128xbf16>, vector<2x16x128xf32> -> vector<2x16x128xf32>
    "tpu.trace_stop"() : () -> ()
    %16 = vector.shape_cast %15 : vector<2x16x128xf32> to vector<32x128xf32>
    %17 = vector.broadcast %6 : vector<1x128xf32> to vector<32x128xf32>
    %18 = arith.addf %16, %17 : vector<32x128xf32>
    %cst_22 = arith.constant 0.000000e+00 : f32
    %19 = vector.broadcast %cst_22 : f32 to vector<32x128xf32>
    %20 = arith.maximumf %18, %19 : vector<32x128xf32>
    %21 = arith.truncf %20 : vector<32x128xf32> to vector<32x128xbf16>
    %cst_23 = arith.constant dense<0.000000e+00> : vector<32x128xf32>
    %22 = tpu.matmul %21, %4, %cst_23 {dimension_numbers = #tpu.dot_dimension_numbers<[1], [0], [0], [1], [0, 0, 1, 1], [], []>} : vector<32x128xbf16>, vector<128x128xbf16>, vector<32x128xf32> -> vector<32x128xf32>
    %23 = arith.truncf %22 : vector<32x128xf32> to vector<32x128xbf16>
    %24 = vector.shape_cast %23 : vector<32x128xbf16> to vector<2x16x128xbf16>
    "tpu.trace_start"() <{level = 10 : i32, message = "gij,gjd->gid"}> : () -> ()
    %cst_24 = arith.constant dense<0.000000e+00> : vector<2x16x128xf32>
    %25 = tpu.matmul %0, %24, %cst_24 {dimension_numbers = #tpu.dot_dimension_numbers<[2], [1], [1], [2], [0, 0, 0, 1, 1, 2], [0], [0]>} : vector<2x16x16xbf16>, vector<2x16x128xbf16>, vector<2x16x128xf32> -> vector<2x16x128xf32>
    "tpu.trace_stop"() : () -> ()
    %26 = vector.shape_cast %25 : vector<2x16x128xf32> to vector<32x128xf32>
    %27 = vector.broadcast %7 : vector<1x128xf32> to vector<32x128xf32>
    %28 = arith.addf %26, %27 : vector<32x128xf32>
    %cst_25 = arith.constant 0.000000e+00 : f32
    %29 = vector.broadcast %cst_25 : f32 to vector<32x128xf32>
    %30 = arith.maximumf %28, %29 : vector<32x128xf32>
    %31 = tpu.concatenate %2, %20, %30 in 1 : vector<32x128xf32>, vector<32x128xf32>, vector<32x128xf32> -> vector<32x384xf32>
    %cst_26 = arith.constant dense<0.000000e+00> : vector<384xf32>
    %32 = vector.multi_reduction <add>, %31, %cst_26 [0] : vector<32x384xf32> to vector<384xf32>
    %33 = vector.shape_cast %32 : vector<384xf32> to vector<1x384xf32>
    %cst_27 = arith.constant 3.125000e-02 : f32
    %34 = vector.broadcast %cst_27 : f32 to vector<1x384xf32>
    %35 = arith.mulf %33, %34 : vector<1x384xf32>
    %36 = arith.mulf %31, %31 : vector<32x384xf32>
    %cst_28 = arith.constant dense<0.000000e+00> : vector<384xf32>
    %37 = vector.multi_reduction <add>, %36, %cst_28 [0] : vector<32x384xf32> to vector<384xf32>
    %38 = vector.shape_cast %37 : vector<384xf32> to vector<1x384xf32>
    %cst_29 = arith.constant 3.125000e-02 : f32
    %39 = vector.broadcast %cst_29 : f32 to vector<1x384xf32>
    %40 = arith.mulf %38, %39 : vector<1x384xf32>
    %41 = arith.mulf %35, %35 : vector<1x384xf32>
    %42 = arith.subf %40, %41 : vector<1x384xf32>
    %cst_30 = arith.constant 9.99999974E-6 : f32
    %43 = vector.broadcast %cst_30 : f32 to vector<1x384xf32>
    %44 = arith.addf %42, %43 : vector<1x384xf32>
    %45 = math.rsqrt %44 : vector<1x384xf32>
    %46 = arith.mulf %45, %9 : vector<1x384xf32>
    %47 = arith.mulf %35, %46 : vector<1x384xf32>
    %48 = arith.subf %10, %47 : vector<1x384xf32>
    %49 = vector.broadcast %46 : vector<1x384xf32> to vector<32x384xf32>
    %50 = arith.mulf %31, %49 : vector<32x384xf32>
    %51 = arith.truncf %50 : vector<32x384xf32> to vector<32x384xbf16>
    %52 = arith.truncf %48 : vector<1x384xf32> to vector<1x384xbf16>
    %cst_31 = arith.constant dense<0.000000e+00> : vector<1x128xf32>
    %53 = tpu.matmul %52, %5, %cst_31 {dimension_numbers = #tpu.dot_dimension_numbers<[1], [0], [0], [1], [0, 0, 1, 1], [], []>} : vector<1x384xbf16>, vector<384x128xbf16>, vector<1x128xf32> -> vector<1x128xf32>
    %54 = arith.addf %53, %8 : vector<1x128xf32>
    %cst_32 = arith.constant dense<0.000000e+00> : vector<32x128xf32>
    %55 = tpu.matmul %51, %5, %cst_32 {dimension_numbers = #tpu.dot_dimension_numbers<[1], [0], [0], [1], [0, 0, 1, 1], [], []>} : vector<32x384xbf16>, vector<384x128xbf16>, vector<32x128xf32> -> vector<32x128xf32>
    %56 = vector.broadcast %54 : vector<1x128xf32> to vector<32x128xf32>
    %57 = arith.addf %55, %56 : vector<32x128xf32>
    %58 = vector.shape_cast %57 : vector<32x128xf32> to vector<2x16x128xf32>
    %c0_33 = arith.constant 0 : index
    %c0_34 = arith.constant 0 : index
    %c0_35 = arith.constant 0 : index
    %59 = vector.load %arg11[%c0_33, %c0_34, %c0_35] : memref<2x16x128xf32, #tpu.memory_space<vmem>>, vector<2x16x128xf32>
    tpu.vector_store %arg11[%c0_33, %c0_34, %c0_35], %58 {strides = array<i32>} : memref<2x16x128xf32, #tpu.memory_space<vmem>>, vector<2x16x128xf32>,
    return
  }
  func.func @transform_0(%arg0: i32) -> (i32, i32, i32) {
    %c0_i32 = arith.constant 0 : i32
    %c0_i32_0 = arith.constant 0 : i32
    %c0_i32_1 = arith.constant 0 : i32
    return %arg0, %c0_i32, %c0_i32_0 : i32, i32, i32
  }
  func.func @transform_1(%arg0: i32) -> (i32, i32, i32) {
    %c0_i32 = arith.constant 0 : i32
    %c0_i32_0 = arith.constant 0 : i32
    %c0_i32_1 = arith.constant 0 : i32
    return %arg0, %c0_i32, %c0_i32_0 : i32, i32, i32
  }
  func.func @transform_2(%arg0: i32) -> (i32, i32) {
    %c0_i32 = arith.constant 0 : i32
    %c0_i32_0 = arith.constant 0 : i32
    %c0_i32_1 = arith.constant 0 : i32
    return %c0_i32, %c0_i32_0 : i32, i32
  }
  func.func @transform_3(%arg0: i32) -> (i32, i32) {
    %c0_i32 = arith.constant 0 : i32
    %c0_i32_0 = arith.constant 0 : i32
    %c0_i32_1 = arith.constant 0 : i32
    return %c0_i32, %c0_i32_0 : i32, i32
  }
  func.func @transform_4(%arg0: i32) -> (i32, i32) {
    %c0_i32 = arith.constant 0 : i32
    %c0_i32_0 = arith.constant 0 : i32
    %c0_i32_1 = arith.constant 0 : i32
    return %c0_i32, %c0_i32_0 : i32, i32
  }
  func.func @transform_5(%arg0: i32) -> (i32, i32) {
    %c0_i32 = arith.constant 0 : i32
    %c0_i32_0 = arith.constant 0 : i32
    %c0_i32_1 = arith.constant 0 : i32
    return %c0_i32, %c0_i32_0 : i32, i32
  }
  func.func @transform_6(%arg0: i32) -> (i32, i32) {
    %c0_i32 = arith.constant 0 : i32
    %c0_i32_0 = arith.constant 0 : i32
    %c0_i32_1 = arith.constant 0 : i32
    return %c0_i32, %c0_i32_0 : i32, i32
  }
  func.func @transform_7(%arg0: i32) -> (i32, i32) {
    %c0_i32 = arith.constant 0 : i32
    %c0_i32_0 = arith.constant 0 : i32
    %c0_i32_1 = arith.constant 0 : i32
    return %c0_i32, %c0_i32_0 : i32, i32
  }
  func.func @transform_8(%arg0: i32) -> (i32, i32) {
    %c0_i32 = arith.constant 0 : i32
    %c0_i32_0 = arith.constant 0 : i32
    %c0_i32_1 = arith.constant 0 : i32
    return %c0_i32, %c0_i32_0 : i32, i32
  }
  func.func @transform_9(%arg0: i32) -> (i32, i32) {
    %c0_i32 = arith.constant 0 : i32
    %c0_i32_0 = arith.constant 0 : i32
    %c0_i32_1 = arith.constant 0 : i32
    return %c0_i32, %c0_i32_0 : i32, i32
  }
  func.func @transform_10(%arg0: i32) -> (i32, i32, i32) {
    %c0_i32 = arith.constant 0 : i32
    %c0_i32_0 = arith.constant 0 : i32
    %c0_i32_1 = arith.constant 0 : i32
    return %arg0, %c0_i32, %c0_i32_0 : i32, i32, i32
  }
}

module attributes {stable_mosaic.version = 11 : i64} {
  func.func @_se_kernel(%arg0: i32, %arg1: memref<2x16x16xbf16, #tpu.memory_space<vmem>>, %arg2: memref<2x16x128xf32, #tpu.memory_space<vmem>>, %arg3: memref<128x128xbf16, #tpu.memory_space<vmem>>, %arg4: memref<1x128xf32, #tpu.memory_space<vmem>>, %arg5: memref<128x128xbf16, #tpu.memory_space<vmem>>, %arg6: memref<1x128xf32, #tpu.memory_space<vmem>>, %arg7: memref<1x384xf32, #tpu.memory_space<vmem>>, %arg8: memref<1x384xf32, #tpu.memory_space<vmem>>, %arg9: memref<384x128xbf16, #tpu.memory_space<vmem>>, %arg10: memref<1x128xf32, #tpu.memory_space<vmem>>, %arg11: memref<2x16x128xf32, #tpu.memory_space<vmem>>) attributes {dimension_semantics = [#tpu.dimension_semantics<parallel>], iteration_bounds = array<i64: 1>, scalar_prefetch = 0 : i64, scratch_operands = 0 : i64, tpu.core_type = #tpu.core_type<tc>, window_params = [{transform_indices = @transform_0, window_bounds = array<i64: 2, 16, 16>}, {transform_indices = @transform_1, window_bounds = array<i64: 2, 16, 128>}, {pipeline_mode = #tpu.pipeline_mode<synchronous>, transform_indices = @transform_2, window_bounds = array<i64: 128, 128>}, {pipeline_mode = #tpu.pipeline_mode<synchronous>, transform_indices = @transform_3, window_bounds = array<i64: 1, 128>}, {pipeline_mode = #tpu.pipeline_mode<synchronous>, transform_indices = @transform_4, window_bounds = array<i64: 128, 128>}, {pipeline_mode = #tpu.pipeline_mode<synchronous>, transform_indices = @transform_5, window_bounds = array<i64: 1, 128>}, {pipeline_mode = #tpu.pipeline_mode<synchronous>, transform_indices = @transform_6, window_bounds = array<i64: 1, 384>}, {pipeline_mode = #tpu.pipeline_mode<synchronous>, transform_indices = @transform_7, window_bounds = array<i64: 1, 384>}, {pipeline_mode = #tpu.pipeline_mode<synchronous>, transform_indices = @transform_8, window_bounds = array<i64: 384, 128>}, {pipeline_mode = #tpu.pipeline_mode<synchronous>, transform_indices = @transform_9, window_bounds = array<i64: 1, 128>}, {transform_indices = @transform_10, window_bounds = array<i64: 2, 16, 128>}]} {
    %c0 = arith.constant 0 : index
    %c0_0 = arith.constant 0 : index
    %c0_1 = arith.constant 0 : index
    %0 = vector.load %arg1[%c0, %c0_0, %c0_1] : memref<2x16x16xbf16, #tpu.memory_space<vmem>>, vector<2x16x16xbf16>
    %c0_2 = arith.constant 0 : index
    %c0_3 = arith.constant 0 : index
    %c0_4 = arith.constant 0 : index
    %1 = vector.load %arg2[%c0_2, %c0_3, %c0_4] : memref<2x16x128xf32, #tpu.memory_space<vmem>>, vector<2x16x128xf32>
    %2 = vector.shape_cast %1 : vector<2x16x128xf32> to vector<32x128xf32>
    %c0_5 = arith.constant 0 : index
    %c0_6 = arith.constant 0 : index
    %3 = vector.load %arg3[%c0_5, %c0_6] : memref<128x128xbf16, #tpu.memory_space<vmem>>, vector<128x128xbf16>
    %c0_7 = arith.constant 0 : index
    %c0_8 = arith.constant 0 : index
    %4 = vector.load %arg5[%c0_7, %c0_8] : memref<128x128xbf16, #tpu.memory_space<vmem>>, vector<128x128xbf16>
    %c0_9 = arith.constant 0 : index
    %c0_10 = arith.constant 0 : index
    %5 = vector.load %arg9[%c0_9, %c0_10] : memref<384x128xbf16, #tpu.memory_space<vmem>>, vector<384x128xbf16>
    %c0_11 = arith.constant 0 : index
    %c0_12 = arith.constant 0 : index
    %6 = vector.load %arg4[%c0_11, %c0_12] : memref<1x128xf32, #tpu.memory_space<vmem>>, vector<1x128xf32>
    %c0_13 = arith.constant 0 : index
    %c0_14 = arith.constant 0 : index
    %7 = vector.load %arg6[%c0_13, %c0_14] : memref<1x128xf32, #tpu.memory_space<vmem>>, vector<1x128xf32>
    %c0_15 = arith.constant 0 : index
    %c0_16 = arith.constant 0 : index
    %8 = vector.load %arg10[%c0_15, %c0_16] : memref<1x128xf32, #tpu.memory_space<vmem>>, vector<1x128xf32>
    %c0_17 = arith.constant 0 : index
    %c0_18 = arith.constant 0 : index
    %9 = vector.load %arg7[%c0_17, %c0_18] : memref<1x384xf32, #tpu.memory_space<vmem>>, vector<1x384xf32>
    %c0_19 = arith.constant 0 : index
    %c0_20 = arith.constant 0 : index
    %10 = vector.load %arg8[%c0_19, %c0_20] : memref<1x384xf32, #tpu.memory_space<vmem>>, vector<1x384xf32>
    %11 = arith.truncf %2 : vector<32x128xf32> to vector<32x128xbf16>
    %cst = arith.constant dense<0.000000e+00> : vector<32x128xf32>
    %12 = tpu.matmul %11, %3, %cst {dimension_numbers = #tpu.dot_dimension_numbers<[1], [0], [0], [1], [0, 0, 1, 1], [], []>} : vector<32x128xbf16>, vector<128x128xbf16>, vector<32x128xf32> -> vector<32x128xf32>
    %13 = arith.truncf %12 : vector<32x128xf32> to vector<32x128xbf16>
    %14 = vector.shape_cast %13 : vector<32x128xbf16> to vector<2x16x128xbf16>
    "tpu.trace_start"() <{level = 10 : i32, message = "gij,gjd->gid"}> : () -> ()
    %cst_21 = arith.constant dense<0.000000e+00> : vector<2x16x128xf32>
    %15 = tpu.matmul %0, %14, %cst_21 {dimension_numbers = #tpu.dot_dimension_numbers<[2], [1], [1], [2], [0, 0, 0, 1, 1, 2], [0], [0]>} : vector<2x16x16xbf16>, vector<2x16x128xbf16>, vector<2x16x128xf32> -> vector<2x16x128xf32>
    "tpu.trace_stop"() : () -> ()
    %16 = vector.shape_cast %15 : vector<2x16x128xf32> to vector<32x128xf32>
    %17 = vector.broadcast %6 : vector<1x128xf32> to vector<32x128xf32>
    %18 = arith.addf %16, %17 : vector<32x128xf32>
    %cst_22 = arith.constant 0.000000e+00 : f32
    %19 = vector.broadcast %cst_22 : f32 to vector<32x128xf32>
    %20 = arith.maximumf %18, %19 : vector<32x128xf32>
    %21 = arith.truncf %20 : vector<32x128xf32> to vector<32x128xbf16>
    %cst_23 = arith.constant dense<0.000000e+00> : vector<32x128xf32>
    %22 = tpu.matmul %21, %4, %cst_23 {dimension_numbers = #tpu.dot_dimension_numbers<[1], [0], [0], [1], [0, 0, 1, 1], [], []>} : vector<32x128xbf16>, vector<128x128xbf16>, vector<32x128xf32> -> vector<32x128xf32>
    %23 = arith.truncf %22 : vector<32x128xf32> to vector<32x128xbf16>
    %24 = vector.shape_cast %23 : vector<32x128xbf16> to vector<2x16x128xbf16>
    "tpu.trace_start"() <{level = 10 : i32, message = "gij,gjd->gid"}> : () -> ()
    %cst_24 = arith.constant dense<0.000000e+00> : vector<2x16x128xf32>
    %25 = tpu.matmul %0, %24, %cst_24 {dimension_numbers = #tpu.dot_dimension_numbers<[2], [1], [1], [2], [0, 0, 0, 1, 1, 2], [0], [0]>} : vector<2x16x16xbf16>, vector<2x16x128xbf16>, vector<2x16x128xf32> -> vector<2x16x128xf32>
    "tpu.trace_stop"() : () -> ()
    %26 = vector.shape_cast %25 : vector<2x16x128xf32> to vector<32x128xf32>
    %27 = vector.broadcast %7 : vector<1x128xf32> to vector<32x128xf32>
    %28 = arith.addf %26, %27 : vector<32x128xf32>
    %cst_25 = arith.constant 0.000000e+00 : f32
    %29 = vector.broadcast %cst_25 : f32 to vector<32x128xf32>
    %30 = arith.maximumf %28, %29 : vector<32x128xf32>
    %31 = tpu.concatenate %2, %20, %30 in 1 : vector<32x128xf32>, vector<32x128xf32>, vector<32x128xf32> -> vector<32x384xf32>
    %cst_26 = arith.constant dense<0.000000e+00> : vector<384xf32>
    %32 = vector.multi_reduction <add>, %31, %cst_26 [0] : vector<32x384xf32> to vector<384xf32>
    %33 = vector.shape_cast %32 : vector<384xf32> to vector<1x384xf32>
    %cst_27 = arith.constant 3.125000e-02 : f32
    %34 = vector.broadcast %cst_27 : f32 to vector<1x384xf32>
    %35 = arith.mulf %33, %34 : vector<1x384xf32>
    %36 = arith.mulf %31, %31 : vector<32x384xf32>
    %cst_28 = arith.constant dense<0.000000e+00> : vector<384xf32>
    %37 = vector.multi_reduction <add>, %36, %cst_28 [0] : vector<32x384xf32> to vector<384xf32>
    %38 = vector.shape_cast %37 : vector<384xf32> to vector<1x384xf32>
    %cst_29 = arith.constant 3.125000e-02 : f32
    %39 = vector.broadcast %cst_29 : f32 to vector<1x384xf32>
    %40 = arith.mulf %38, %39 : vector<1x384xf32>
    %41 = arith.mulf %35, %35 : vector<1x384xf32>
    %42 = arith.subf %40, %41 : vector<1x384xf32>
    %cst_30 = arith.constant 9.99999974E-6 : f32
    %43 = vector.broadcast %cst_30 : f32 to vector<1x384xf32>
    %44 = arith.addf %42, %43 : vector<1x384xf32>
    %45 = math.rsqrt %44 : vector<1x384xf32>
    %46 = arith.mulf %45, %9 : vector<1x384xf32>
    %47 = arith.mulf %35, %46 : vector<1x384xf32>
    %48 = arith.subf %10, %47 : vector<1x384xf32>
    %49 = vector.broadcast %46 : vector<1x384xf32> to vector<32x384xf32>
    %50 = arith.mulf %31, %49 : vector<32x384xf32>
    %51 = arith.truncf %50 : vector<32x384xf32> to vector<32x384xbf16>
    %52 = arith.truncf %48 : vector<1x384xf32> to vector<1x384xbf16>
    %cst_31 = arith.constant dense<0.000000e+00> : vector<1x128xf32>
    %53 = tpu.matmul %52, %5, %cst_31 {dimension_numbers = #tpu.dot_dimension_numbers<[1], [0], [0], [1], [0, 0, 1, 1], [], []>} : vector<1x384xbf16>, vector<384x128xbf16>, vector<1x128xf32> -> vector<1x128xf32>
    %54 = arith.addf %53, %8 : vector<1x128xf32>
    %cst_32 = arith.constant dense<0.000000e+00> : vector<32x128xf32>
    %55 = tpu.matmul %51, %5, %cst_32 {dimension_numbers = #tpu.dot_dimension_numbers<[1], [0], [0], [1], [0, 0, 1, 1], [], []>} : vector<32x384xbf16>, vector<384x128xbf16>, vector<32x128xf32> -> vector<32x128xf32>
    %56 = vector.broadcast %54 : vector<1x128xf32> to vector<32x128xf32>
    %57 = arith.addf %55, %56 : vector<32x128xf32>
    %58 = vector.shape_cast %57 : vector<32x128xf32> to vector<2x16x128xf32>
    %c0_33 = arith.constant 0 : index
    %c0_34 = arith.constant 0 : index
    %c0_35 = arith.constant 0 : index
    %59 = vector.load %arg11[%c0_33, %c0_34, %c0_35] : memref<2x16x128xf32, #tpu.memory_space<vmem>>, vector<2x16x128xf32>
    tpu.vector_store %arg11[%c0_33, %c0_34, %c0_35], %58 {strides = array<i32>} : memref<2x16x128xf32, #tpu.memory_space<vmem>>, vector<2x16x128xf32>,
    return
  }
  func.func @transform_0(%arg0: i32) -> (i32, i32, i32) {
    %c0_i32 = arith.constant 0 : i32
    %c0_i32_0 = arith.constant 0 : i32
    %c0_i32_1 = arith.constant 0 : i32
    return %arg0, %c0_i32, %c0_i32_0 : i32, i32, i32
  }
  func.func @transform_1(%arg0: i32) -> (i32, i32, i32) {
    %c0_i32 = arith.constant 0 : i32
    %c0_i32_0 = arith.constant 0 : i32
    %c0_i32_1 = arith.constant 0 : i32
    return %arg0, %c0_i32, %c0_i32_0 : i32, i32, i32
  }
  func.func @transform_2(%arg0: i32) -> (i32, i32) {
    %c0_i32 = arith.constant 0 : i32
    %c0_i32_0 = arith.constant 0 : i32
    %c0_i32_1 = arith.constant 0 : i32
    return %c0_i32, %c0_i32_0 : i32, i32
  }
  func.func @transform_3(%arg0: i32) -> (i32, i32) {
    %c0_i32 = arith.constant 0 : i32
    %c0_i32_0 = arith.constant 0 : i32
    %c0_i32_1 = arith.constant 0 : i32
    return %c0_i32, %c0_i32_0 : i32, i32
  }
  func.func @transform_4(%arg0: i32) -> (i32, i32) {
    %c0_i32 = arith.constant 0 : i32
    %c0_i32_0 = arith.constant 0 : i32
    %c0_i32_1 = arith.constant 0 : i32
    return %c0_i32, %c0_i32_0 : i32, i32
  }
  func.func @transform_5(%arg0: i32) -> (i32, i32) {
    %c0_i32 = arith.constant 0 : i32
    %c0_i32_0 = arith.constant 0 : i32
    %c0_i32_1 = arith.constant 0 : i32
    return %c0_i32, %c0_i32_0 : i32, i32
  }
  func.func @transform_6(%arg0: i32) -> (i32, i32) {
    %c0_i32 = arith.constant 0 : i32
    %c0_i32_0 = arith.constant 0 : i32
    %c0_i32_1 = arith.constant 0 : i32
    return %c0_i32, %c0_i32_0 : i32, i32
  }
  func.func @transform_7(%arg0: i32) -> (i32, i32) {
    %c0_i32 = arith.constant 0 : i32
    %c0_i32_0 = arith.constant 0 : i32
    %c0_i32_1 = arith.constant 0 : i32
    return %c0_i32, %c0_i32_0 : i32, i32
  }
  func.func @transform_8(%arg0: i32) -> (i32, i32) {
    %c0_i32 = arith.constant 0 : i32
    %c0_i32_0 = arith.constant 0 : i32
    %c0_i32_1 = arith.constant 0 : i32
    return %c0_i32, %c0_i32_0 : i32, i32
  }
  func.func @transform_9(%arg0: i32) -> (i32, i32) {
    %c0_i32 = arith.constant 0 : i32
    %c0_i32_0 = arith.constant 0 : i32
    %c0_i32_1 = arith.constant 0 : i32
    return %c0_i32, %c0_i32_0 : i32, i32
  }
  func.func @transform_10(%arg0: i32) -> (i32, i32, i32) {
    %c0_i32 = arith.constant 0 : i32
    %c0_i32_0 = arith.constant 0 : i32
    %c0_i32_1 = arith.constant 0 : i32
    return %arg0, %c0_i32, %c0_i32_0 : i32, i32, i32
  }
}

</mosaic_0001>

<llo_original>
// kernel: tpu_custom_call.1
$region0: #{tpu_custom_call.1}
  #allocation0 [shape = 'u32[]', space=smem, size = 0x4, offset = 0x4, fixed_abs, tag = 'smem constant byte address 0x4 - core index']
  #allocation1 [shape = 'u32[144,128]{1,0:T(1,128)}', space=vmem, size = 0x12000, scoped, tag = 'internal scratch']
  %s0 = inlined_call_operand.hbm [shape: bf16[2,16,16], index: 0, kind: input, shape index: {}]
  %s1 = inlined_call_operand.hbm [shape: f32[2,16,128], index: 1, kind: input, shape index: {}]
  %s2 = inlined_call_operand.hbm [shape: bf16[128,128], index: 2, kind: input, shape index: {}]
  %s3 = inlined_call_operand.vmem [shape: f32[1,128], index: 3, kind: input, shape index: {}]
  %s4 = inlined_call_operand.hbm [shape: bf16[128,128], index: 4, kind: input, shape index: {}]
  %s5 = inlined_call_operand.vmem [shape: f32[1,128], index: 5, kind: input, shape index: {}]
  %s6 = inlined_call_operand.vmem [shape: f32[1,384], index: 6, kind: input, shape index: {}]
  %s7 = inlined_call_operand.vmem [shape: f32[1,384], index: 7, kind: input, shape index: {}]
  %s8 = inlined_call_operand.hbm [shape: bf16[384,128], index: 8, kind: input, shape index: {}]
  %s9 = inlined_call_operand.vmem [shape: f32[1,128], index: 9, kind: input, shape index: {}]
  %s10 = inlined_call_operand.hbm [shape: f32[2,16,128], index: 10, kind: output, shape index: {}]
  %s11 = sld [smem:[#allocation0]]
  $region70: #{tpu_custom_call.1} parent=0
    _
  %s13 = ssub.s32 1, %s11
  %s14 = scalar_select 0, %s13, %s11
  $region1: #{tpu_custom_call.1} parent=0
    #allocation2 [shape = 'u8[8192]{0}', space=vmem, size = 0x2000, scoped, tag = 'input window, operand 0, single buffered']
    #allocation3 [shape = 's32[1]{0}', space=sflag, size = 0x4, scoped, tag = 'scoped memory for tpu_custom_call.1']
    #allocation4 [shape = 's32[1]{0}', space=sflag, size = 0x4, scoped, tag = 'scoped memory for tpu_custom_call.1']
    #allocation5 [shape = 'u8[16384]{0}', space=vmem, size = 0x4000, scoped, tag = 'input window, operand 1, single buffered']
    #allocation6 [shape = 's32[1]{0}', space=sflag, size = 0x4, scoped, tag = 'scoped memory for tpu_custom_call.1']
    #allocation7 [shape = 'u8[32768]{0}', space=vmem, size = 0x8000, scoped, tag = 'input window, operand 2, single buffered']
    #allocation8 [shape = 'u8[32768]{0}', space=vmem, size = 0x8000, scoped, tag = 'input window, operand 4, single buffered']
    #allocation9 [shape = 's32[1]{0}', space=sflag, size = 0x4, scoped, tag = 'scoped memory for tpu_custom_call.1']
    #allocation10 [shape = 'u8[98304]{0}', space=vmem, size = 0x18000, scoped, tag = 'input window, operand 8, single buffered']
    #allocation11 [shape = 'u8[16384]{0}', space=vmem, size = 0x4000, scoped, tag = 'output window, operand 0, single buffered']
    %15 = vsyncpa [#allocation3], 0
    %16 = vsyncpa [#allocation6], 0
    %17 = vsyncpa [#allocation9], 0
    %18 = vsyncpa [#allocation4], 0
    // Predicated region
    $region2: #{tpu_custom_call.1} parent=1 // pred_check
      _
    $region3: #{tpu_custom_call.1} parent=1 // pred_check_branch
      %20 = sbr.rel (0) target = $region5
    $region4: #{tpu_custom_call.1} parent=1 // pred_region
      %s22 = ssub.s32 256, 256
      %23 = vsyncadd [#allocation3], %s22
      %s24 = sshll.u32 [#allocation2], 4
      %s25 = int_to_ptr.vmem [resolvable:$true] %s24
      %30 = dma.hbm_to_vmem [thread:$0]  %s0, 256, %s25, [#allocation3], 64, 64, 4
    $region5: #{tpu_custom_call.1} parent=1 // pred_fallthru
      _
    // Predicated region
    $region6: #{tpu_custom_call.1} parent=1 // pred_check
      _
    $region7: #{tpu_custom_call.1} parent=1 // pred_check_branch
      %32 = sbr.rel (0) target = $region9
    $region8: #{tpu_custom_call.1} parent=1 // pred_region
      %s34 = ssub.s32 512, 512
      %35 = vsyncadd [#allocation6], %s34
      %s36 = sshll.u32 [#allocation5], 4
      %s37 = int_to_ptr.vmem [resolvable:$true] %s36
      %42 = dma.hbm_to_vmem [thread:$0]  %s1, 512, %s37, [#allocation6], 128, 128, 8
    $region9: #{tpu_custom_call.1} parent=1 // pred_fallthru
      _
    // Predicated region
    $region10: #{tpu_custom_call.1} parent=1 // pred_check
      _
    $region11: #{tpu_custom_call.1} parent=1 // pred_check_branch
      %44 = sbr.rel (0) target = $region13
    $region12: #{tpu_custom_call.1} parent=1 // pred_region
      %s46 = ssub.s32 1024, 1024
      %47 = vsyncadd [#allocation6], %s46
      %s48 = sshll.u32 [#allocation7], 4
      %s49 = int_to_ptr.vmem [resolvable:$true] %s48
      %54 = dma.hbm_to_vmem [thread:$0]  %s2, 1024, %s49, [#allocation6], 64, 64, 4
    $region13: #{tpu_custom_call.1} parent=1 // pred_fallthru
      _
    // Predicated region
    $region14: #{tpu_custom_call.1} parent=1 // pred_check
      _
    $region15: #{tpu_custom_call.1} parent=1 // pred_check_branch
      %56 = sbr.rel (0) target = $region17
    $region16: #{tpu_custom_call.1} parent=1 // pred_region
      _
    $region17: #{tpu_custom_call.1} parent=1 // pred_fallthru
      _
    // Predicated region
    $region18: #{tpu_custom_call.1} parent=1 // pred_check
      _
    $region19: #{tpu_custom_call.1} parent=1 // pred_check_branch
      %58 = sbr.rel (0) target = $region21
    $region20: #{tpu_custom_call.1} parent=1 // pred_region
      %s60 = ssub.s32 1024, 1024
      %61 = vsyncadd [#allocation9], %s60
      %s62 = sshll.u32 [#allocation8], 4
      %s63 = int_to_ptr.vmem [resolvable:$true] %s62
      %68 = dma.hbm_to_vmem [thread:$0]  %s4, 1024, %s63, [#allocation9], 64, 64, 4
    $region21: #{tpu_custom_call.1} parent=1 // pred_fallthru
      _
    // Predicated region
    $region22: #{tpu_custom_call.1} parent=1 // pred_check
      _
    $region23: #{tpu_custom_call.1} parent=1 // pred_check_branch
      %70 = sbr.rel (0) target = $region25
    $region24: #{tpu_custom_call.1} parent=1 // pred_region
      _
    $region25: #{tpu_custom_call.1} parent=1 // pred_fallthru
      _
    // Predicated region
    $region26: #{tpu_custom_call.1} parent=1 // pred_check
      _
    $region27: #{tpu_custom_call.1} parent=1 // pred_check_branch
      %72 = sbr.rel (0) target = $region29
    $region28: #{tpu_custom_call.1} parent=1 // pred_region
      _
    $region29: #{tpu_custom_call.1} parent=1 // pred_fallthru
      _
    // Predicated region
    $region30: #{tpu_custom_call.1} parent=1 // pred_check
      _
    $region31: #{tpu_custom_call.1} parent=1 // pred_check_branch
      %74 = sbr.rel (0) target = $region33
    $region32: #{tpu_custom_call.1} parent=1 // pred_region
      _
    $region33: #{tpu_custom_call.1} parent=1 // pred_fallthru
      _
    // Predicated region
    $region34: #{tpu_custom_call.1} parent=1 // pred_check
      _
    $region35: #{tpu_custom_call.1} parent=1 // pred_check_branch
      %76 = sbr.rel (0) target = $region37
    $region36: #{tpu_custom_call.1} parent=1 // pred_region
      %s78 = ssub.s32 3072, 3072
      %79 = vsyncadd [#allocation9], %s78
      %s80 = sshll.u32 [#allocation10], 4
      %s81 = int_to_ptr.vmem [resolvable:$true] %s80
      %86 = dma.hbm_to_vmem [thread:$0]  %s8, 3072, %s81, [#allocation9], 64, 64, 4
    $region37: #{tpu_custom_call.1} parent=1 // pred_fallthru
      _
    // Predicated region
    $region38: #{tpu_custom_call.1} parent=1 // pred_check
      _
    $region39: #{tpu_custom_call.1} parent=1 // pred_check_branch
      %88 = sbr.rel (0) target = $region41
    $region40: #{tpu_custom_call.1} parent=1 // pred_region
      _
    $region41: #{tpu_custom_call.1} parent=1 // pred_fallthru
      _
    // Predicated region
    $region42: #{tpu_custom_call.1} parent=1 // pred_check
      _
    $region43: #{tpu_custom_call.1} parent=1 // pred_check_branch
      %90 = sbr.rel (0) target = $region45
    $region44: #{tpu_custom_call.1} parent=1 // pred_region
      %91 = dma.done [#allocation3], 256
    $region45: #{tpu_custom_call.1} parent=1 // pred_fallthru
      _
    // Predicated region
    $region46: #{tpu_custom_call.1} parent=1 // pred_check
      _
    $region47: #{tpu_custom_call.1} parent=1 // pred_check_branch
      %93 = sbr.rel (0) target = $region49
    $region48: #{tpu_custom_call.1} parent=1 // pred_region
      %94 = dma.done [#allocation6], 512
    $region49: #{tpu_custom_call.1} parent=1 // pred_fallthru
      _
    // Predicated region
    $region50: #{tpu_custom_call.1} parent=1 // pred_check
      _
    $region51: #{tpu_custom_call.1} parent=1 // pred_check_branch
      %96 = sbr.rel (0) target = $region53
    $region52: #{tpu_custom_call.1} parent=1 // pred_region
      %97 = dma.done [#allocation6], 1024
    $region53: #{tpu_custom_call.1} parent=1 // pred_fallthru
      _
    // Predicated region
    $region54: #{tpu_custom_call.1} parent=1 // pred_check
      _
    $region55: #{tpu_custom_call.1} parent=1 // pred_check_branch
      %99 = sbr.rel (0) target = $region57
    $region56: #{tpu_custom_call.1} parent=1 // pred_region
      %100 = dma.done [#allocation9], 1024
    $region57: #{tpu_custom_call.1} parent=1 // pred_fallthru
      _
    // Predicated region
    $region58: #{tpu_custom_call.1} parent=1 // pred_check
      _
    $region59: #{tpu_custom_call.1} parent=1 // pred_check_branch
      %102 = sbr.rel (0) target = $region61
    $region60: #{tpu_custom_call.1} parent=1 // pred_region
      %103 = dma.done [#allocation9], 3072
    $region61: #{tpu_custom_call.1} parent=1 // pred_fallthru
      _
    %v105 = vld [vmem:[#allocation2] sm:$0xf]
    %v106 = vld [vmem:[#allocation2 + $0x4] sm:$0xf]
    %v107 = vld [vmem:[#allocation2 + $0x8] sm:$0xf]
    %v108 = vld [vmem:[#allocation2 + $0xc] sm:$0xf]
    %v109 = vld [vmem:[#allocation5] sm:$0xff]
    %v110 = vld [vmem:[#allocation5 + $0x8] sm:$0xff]
    %v111 = vld [vmem:[#allocation5 + $0x10] sm:$0xff]
    %v112 = vld [vmem:[#allocation5 + $0x18] sm:$0xff]
    %v113 = vld [vmem:[#allocation7] sm:$0xf]
    %v114 = vld [vmem:[#allocation7 + $0x4] sm:$0xf]
    %v115 = vld [vmem:[#allocation7 + $0x8] sm:$0xf]
    %v116 = vld [vmem:[#allocation7 + $0xc] sm:$0xf]
    %v117 = vld [vmem:[#allocation7 + $0x10] sm:$0xf]
    %v118 = vld [vmem:[#allocation7 + $0x14] sm:$0xf]
    %v119 = vld [vmem:[#allocation7 + $0x18] sm:$0xf]
    %v120 = vld [vmem:[#allocation7 + $0x1c] sm:$0xf]
    %v121 = vld [vmem:[#allocation7 + $0x20] sm:$0xf]
    %v122 = vld [vmem:[#allocation7 + $0x24] sm:$0xf]
    %v123 = vld [vmem:[#allocation7 + $0x28] sm:$0xf]
    %v124 = vld [vmem:[#allocation7 + $0x2c] sm:$0xf]
    %v125 = vld [vmem:[#allocation7 + $0x30] sm:$0xf]
    %v126 = vld [vmem:[#allocation7 + $0x34] sm:$0xf]
    %v127 = vld [vmem:[#allocation7 + $0x38] sm:$0xf]
    %v128 = vld [vmem:[#allocation7 + $0x3c] sm:$0xf]
    %v129 = vld [vmem:[#allocation8] sm:$0xf]
    %v130 = vld [vmem:[#allocation8 + $0x4] sm:$0xf]
    %v131 = vld [vmem:[#allocation8 + $0x8] sm:$0xf]
    %v132 = vld [vmem:[#allocation8 + $0xc] sm:$0xf]
    %v133 = vld [vmem:[#allocation8 + $0x10] sm:$0xf]
    %v134 = vld [vmem:[#allocation8 + $0x14] sm:$0xf]
    %v135 = vld [vmem:[#allocation8 + $0x18] sm:$0xf]
    %v136 = vld [vmem:[#allocation8 + $0x1c] sm:$0xf]
    %v137 = vld [vmem:[#allocation8 + $0x20] sm:$0xf]
    %v138 = vld [vmem:[#allocation8 + $0x24] sm:$0xf]
    %v139 = vld [vmem:[#allocation8 + $0x28] sm:$0xf]
    %v140 = vld [vmem:[#allocation8 + $0x2c] sm:$0xf]
    %v141 = vld [vmem:[#allocation8 + $0x30] sm:$0xf]
    %v142 = vld [vmem:[#allocation8 + $0x34] sm:$0xf]
    %v143 = vld [vmem:[#allocation8 + $0x38] sm:$0xf]
    %v144 = vld [vmem:[#allocation8 + $0x3c] sm:$0xf]
    %v145 = vld [vmem:[#allocation10] sm:$0xf]
    %v146 = vld [vmem:[#allocation10 + $0x4] sm:$0xf]
    %v147 = vld [vmem:[#allocation10 + $0x8] sm:$0xf]
    %v148 = vld [vmem:[#allocation10 + $0xc] sm:$0xf]
    %v149 = vld [vmem:[#allocation10 + $0x10] sm:$0xf]
    %v150 = vld [vmem:[#allocation10 + $0x14] sm:$0xf]
    %v151 = vld [vmem:[#allocation10 + $0x18] sm:$0xf]
    %v152 = vld [vmem:[#allocation10 + $0x1c] sm:$0xf]
    %v153 = vld [vmem:[#allocation10 + $0x20] sm:$0xf]
    %v154 = vld [vmem:[#allocation10 + $0x24] sm:$0xf]
    %v155 = vld [vmem:[#allocation10 + $0x28] sm:$0xf]
    %v156 = vld [vmem:[#allocation10 + $0x2c] sm:$0xf]
    %v157 = vld [vmem:[#allocation10 + $0x30] sm:$0xf]
    %v158 = vld [vmem:[#allocation10 + $0x34] sm:$0xf]
    %v159 = vld [vmem:[#allocation10 + $0x38] sm:$0xf]
    %v160 = vld [vmem:[#allocation10 + $0x3c] sm:$0xf]
    %v161 = vld [vmem:[#allocation10 + $0x40] sm:$0xf]
    %v162 = vld [vmem:[#allocation10 + $0x44] sm:$0xf]
    %v163 = vld [vmem:[#allocation10 + $0x48] sm:$0xf]
    %v164 = vld [vmem:[#allocation10 + $0x4c] sm:$0xf]
    %v165 = vld [vmem:[#allocation10 + $0x50] sm:$0xf]
    %v166 = vld [vmem:[#allocation10 + $0x54] sm:$0xf]
    %v167 = vld [vmem:[#allocation10 + $0x58] sm:$0xf]
    %v168 = vld [vmem:[#allocation10 + $0x5c] sm:$0xf]
    %v169 = vld [vmem:[#allocation10 + $0x60] sm:$0xf]
    %v170 = vld [vmem:[#allocation10 + $0x64] sm:$0xf]
    %v171 = vld [vmem:[#allocation10 + $0x68] sm:$0xf]
    %v172 = vld [vmem:[#allocation10 + $0x6c] sm:$0xf]
    %v173 = vld [vmem:[#allocation10 + $0x70] sm:$0xf]
    %v174 = vld [vmem:[#allocation10 + $0x74] sm:$0xf]
    %v175 = vld [vmem:[#allocation10 + $0x78] sm:$0xf]
    %v176 = vld [vmem:[#allocation10 + $0x7c] sm:$0xf]
    %v177 = vld [vmem:[#allocation10 + $0x80] sm:$0xf]
    %v178 = vld [vmem:[#allocation10 + $0x84] sm:$0xf]
    %v179 = vld [vmem:[#allocation10 + $0x88] sm:$0xf]
    %v180 = vld [vmem:[#allocation10 + $0x8c] sm:$0xf]
    %v181 = vld [vmem:[#allocation10 + $0x90] sm:$0xf]
    %v182 = vld [vmem:[#allocation10 + $0x94] sm:$0xf]
    %v183 = vld [vmem:[#allocation10 + $0x98] sm:$0xf]
    %v184 = vld [vmem:[#allocation10 + $0x9c] sm:$0xf]
    %v185 = vld [vmem:[#allocation10 + $0xa0] sm:$0xf]
    %v186 = vld [vmem:[#allocation10 + $0xa4] sm:$0xf]
    %v187 = vld [vmem:[#allocation10 + $0xa8] sm:$0xf]
    %v188 = vld [vmem:[#allocation10 + $0xac] sm:$0xf]
    %v189 = vld [vmem:[#allocation10 + $0xb0] sm:$0xf]
    %v190 = vld [vmem:[#allocation10 + $0xb4] sm:$0xf]
    %v191 = vld [vmem:[#allocation10 + $0xb8] sm:$0xf]
    %v192 = vld [vmem:[#allocation10 + $0xbc] sm:$0xf]
    %v193 = vld [vmem:[%s3] sm:$0x1]
    %v194 = vld [vmem:[%s5] sm:$0x1]
    %v195 = vld [vmem:[%s9] sm:$0x1]
    %v196 = vld [vmem:[%s6] sm:$0x7]
    %v197 = vld [vmem:[%s7] sm:$0x7]
    %v198 = vpack.c.bf16 %v110, %v109
    %v199 = vpack.c.bf16 %v112, %v111
    %v216 = vunpack.c.l.b16 %v113
    %v217 = vunpack.c.l.b16 %v114
    %v218 = vunpack.c.l.b16 %v115
    %v219 = vunpack.c.l.b16 %v116
    %v220 = vunpack.c.l.b16 %v117
    %v221 = vunpack.c.l.b16 %v118
    %v222 = vunpack.c.l.b16 %v119
    %v223 = vunpack.c.l.b16 %v120
    %v224 = vunpack.c.l.b16 %v121
    %v225 = vunpack.c.l.b16 %v122
    %v226 = vunpack.c.l.b16 %v123
    %v227 = vunpack.c.l.b16 %v124
    %v228 = vunpack.c.l.b16 %v125
    %v229 = vunpack.c.l.b16 %v126
    %v230 = vunpack.c.l.b16 %v127
    %v231 = vunpack.c.l.b16 %v128
    %v232 = vpack.c.b16 %v217, %v216
    %v233 = vpack.c.b16 %v219, %v218
    %v234 = vpack.c.b16 %v221, %v220
    %v235 = vpack.c.b16 %v223, %v222
    %v236 = vpack.c.b16 %v225, %v224
    %v237 = vpack.c.b16 %v227, %v226
    %v238 = vpack.c.b16 %v229, %v228
    %v239 = vpack.c.b16 %v231, %v230
    %248 = vmatprep.subr.bf16.mxu0 0
    %249 = vmatpush1.bf16.msra.mxu0 %v239
    %250 = vmatprep.subr.bf16.mxu0 0
    %251 = vmatpush1.bf16.msra.mxu0 %v238
    %252 = vmatprep.subr.bf16.mxu0 0
    %253 = vmatpush1.bf16.msra.mxu0 %v237
    %254 = vmatprep.subr.bf16.mxu0 0
    %255 = vmatpush1.bf16.msra.mxu0 %v236
    %256 = vmatprep.subr.bf16.mxu0 0
    %257 = vmatpush1.bf16.msra.mxu0 %v235
    %258 = vmatprep.subr.bf16.mxu0 0
    %259 = vmatpush1.bf16.msra.mxu0 %v234
    %260 = vmatprep.subr.bf16.mxu0 0
    %261 = vmatpush1.bf16.msra.mxu0 %v233
    %262 = vmatprep.subr.bf16.mxu0 0
    %263 = vmatpush1.bf16.msra.mxu0 %v232
    %264 = vmatprep.subr.bf16.mxu0 0
    %265 = vmatpush2.bf16.msra.mxu0 0
    %266 = vmatprep.subr.bf16.mxu0 0
    %267 = vmatpush2.bf16.msra.mxu0 0
    %268 = vmatprep.subr.bf16.mxu0 0
    %269 = vmatpush2.bf16.msra.mxu0 0
    %270 = vmatprep.subr.bf16.mxu0 0
    %271 = vmatpush2.bf16.msra.mxu0 0
    %272 = vmatprep.subr.bf16.mxu0 0
    %273 = vmatpush2.bf16.msra.mxu0 0
    %274 = vmatprep.subr.bf16.mxu0 0
    %275 = vmatpush2.bf16.msra.mxu0 0
    %276 = vmatprep.subr.bf16.mxu0 0
    %277 = vmatpush2.bf16.msra.mxu0 0
    %278 = vmatprep.subr.bf16.mxu0 0
    %279 = vmatpush2.bf16.msra.mxu0 0
    %280 = vmatprep.mubr.bf16.mxu0 0
    %281 = vmatmul.mubr.bf16.gmra.mxu0 %v198
    %v282 = vpop.f32.mrf.mxu0
    %v283 = vadd.f32 0.0, %v282
    %v284 = vpop.f32.mrf.mxu0
    %v285 = vpop.f32.mrf.mxu0
    %v286 = vadd.f32 0.0, %v285
    %v287 = vpop.f32.mrf.mxu0
    %288 = vmatprep.mubr.bf16.mxu0 0
    %289 = vmatmul.mubr.bf16.gmra.mxu0 %v199
    %v290 = vpop.f32.mrf.mxu0
    %v291 = vadd.f32 0.0, %v290
    %v292 = vpop.f32.mrf.mxu0
    %v293 = vpop.f32.mrf.mxu0
    %v294 = vadd.f32 0.0, %v293
    %v295 = vpop.f32.mrf.mxu0
    %296 = vdwg.mxu0
    %v297 = vpack.c.bf16 %v286, %v283
    %v298 = vpack.c.bf16 %v294, %v291
    %v301 = vunpack.c.l.b16 %v105
    %v302 = vunpack.c.l.b16 %v106
    %v303 = vpack.c.b16 %v302, %v301
    %vm304 = vcmask 130048
    %v306 = vsel %vm304, %v303, 0
    %308 = vmatprep.subr.bf16.mxu0 0
    %309 = vmatpush1.bf16.msra.mxu0 0
    %310 = vmatprep.subr.bf16.mxu0 0
    %311 = vmatpush1.bf16.msra.mxu0 0
    %312 = vmatprep.subr.bf16.mxu0 0
    %313 = vmatpush1.bf16.msra.mxu0 0
    %314 = vmatprep.subr.bf16.mxu0 0
    %315 = vmatpush1.bf16.msra.mxu0 0
    %316 = vmatprep.subr.bf16.mxu0 0
    %317 = vmatpush1.bf16.msra.mxu0 0
    %318 = vmatprep.subr.bf16.mxu0 0
    %319 = vmatpush1.bf16.msra.mxu0 0
    %320 = vmatprep.subr.bf16.mxu0 0
    %321 = vmatpush1.bf16.msra.mxu0 0
    %322 = vmatprep.subr.bf16.mxu0 0
    %323 = vmatpush1.bf16.msra.mxu0 %v297
    %324 = vmatprep.subr.bf16.mxu0 0
    %325 = vmatpush2.bf16.msra.mxu0 0
    %326 = vmatprep.subr.bf16.mxu0 0
    %327 = vmatpush2.bf16.msra.mxu0 0
    %328 = vmatprep.subr.bf16.mxu0 0
    %329 = vmatpush2.bf16.msra.mxu0 0
    %330 = vmatprep.subr.bf16.mxu0 0
    %331 = vmatpush2.bf16.msra.mxu0 0
    %332 = vmatprep.subr.bf16.mxu0 0
    %333 = vmatpush2.bf16.msra.mxu0 0
    %334 = vmatprep.subr.bf16.mxu0 0
    %335 = vmatpush2.bf16.msra.mxu0 0
    %336 = vmatprep.subr.bf16.mxu0 0
    %337 = vmatpush2.bf16.msra.mxu0 0
    %338 = vmatprep.subr.bf16.mxu0 0
    %339 = vmatpush2.bf16.msra.mxu0 0
    %340 = vmatprep.mubr.bf16.mxu0 0
    %341 = vmatmul.mubr.bf16.gmra.mxu0 %v306
    %v342 = vpop.f32.mrf.mxu0
    %v343 = vadd.f32 0.0, %v342
    %v344 = vpop.f32.mrf.mxu0
    %v345 = vpop.f32.mrf.mxu0
    %v346 = vadd.f32 0.0, %v345
    %v347 = vpop.f32.mrf.mxu0
    %348 = vdwg.mxu0
    %v351 = vunpack.c.l.b16 %v107
    %v352 = vunpack.c.l.b16 %v108
    %v353 = vpack.c.b16 %v352, %v351
    %v355 = vsel %vm304, %v353, 0
    %357 = vmatprep.subr.bf16.mxu0 0
    %358 = vmatpush1.bf16.msra.mxu0 0
    %359 = vmatprep.subr.bf16.mxu0 0
    %360 = vmatpush1.bf16.msra.mxu0 0
    %361 = vmatprep.subr.bf16.mxu0 0
    %362 = vmatpush1.bf16.msra.mxu0 0
    %363 = vmatprep.subr.bf16.mxu0 0
    %364 = vmatpush1.bf16.msra.mxu0 0
    %365 = vmatprep.subr.bf16.mxu0 0
    %366 = vmatpush1.bf16.msra.mxu0 0
    %367 = vmatprep.subr.bf16.mxu0 0
    %368 = vmatpush1.bf16.msra.mxu0 0
    %369 = vmatprep.subr.bf16.mxu0 0
    %370 = vmatpush1.bf16.msra.mxu0 0
    %371 = vmatprep.subr.bf16.mxu0 0
    %372 = vmatpush1.bf16.msra.mxu0 %v298
    %373 = vmatprep.subr.bf16.mxu0 0
    %374 = vmatpush2.bf16.msra.mxu0 0
    %375 = vmatprep.subr.bf16.mxu0 0
    %376 = vmatpush2.bf16.msra.mxu0 0
    %377 = vmatprep.subr.bf16.mxu0 0
    %378 = vmatpush2.bf16.msra.mxu0 0
    %379 = vmatprep.subr.bf16.mxu0 0
    %380 = vmatpush2.bf16.msra.mxu0 0
    %381 = vmatprep.subr.bf16.mxu0 0
    %382 = vmatpush2.bf16.msra.mxu0 0
    %383 = vmatprep.subr.bf16.mxu0 0
    %384 = vmatpush2.bf16.msra.mxu0 0
    %385 = vmatprep.subr.bf16.mxu0 0
    %386 = vmatpush2.bf16.msra.mxu0 0
    %387 = vmatprep.subr.bf16.mxu0 0
    %388 = vmatpush2.bf16.msra.mxu0 0
    %389 = vmatprep.mubr.bf16.mxu0 0
    %390 = vmatmul.mubr.bf16.gmra.mxu0 %v355
    %v391 = vpop.f32.mrf.mxu0
    %v392 = vadd.f32 0.0, %v391
    %v393 = vpop.f32.mrf.mxu0
    %v394 = vpop.f32.mrf.mxu0
    %v395 = vadd.f32 0.0, %v394
    %v396 = vpop.f32.mrf.mxu0
    %397 = vdwg.mxu0
    %v399 = vlaneseq
    %v400 = vshrl.u32 %v399, 7
    %v401 = vsub.s32 0, %v400
    %v402 = vrot.slane %v193, %v401
    %v404 = vadd.f32 %v343, %v402
    %v405 = vadd.f32 %v346, %v402
    %v406 = vadd.f32 %v392, %v402
    %v407 = vadd.f32 %v395, %v402
    %v408 = vmax.f32 %v404, 0.0
    %v409 = vmax.f32 %v405, 0.0
    %v410 = vmax.f32 %v406, 0.0
    %v411 = vmax.f32 %v407, 0.0
    %v412 = vpack.c.bf16 %v409, %v408
    %v413 = vpack.c.bf16 %v411, %v410
    %v430 = vunpack.c.l.b16 %v129
    %v431 = vunpack.c.l.b16 %v130
    %v432 = vunpack.c.l.b16 %v131
    %v433 = vunpack.c.l.b16 %v132
    %v434 = vunpack.c.l.b16 %v133
    %v435 = vunpack.c.l.b16 %v134
    %v436 = vunpack.c.l.b16 %v135
    %v437 = vunpack.c.l.b16 %v136
    %v438 = vunpack.c.l.b16 %v137
    %v439 = vunpack.c.l.b16 %v138
    %v440 = vunpack.c.l.b16 %v139
    %v441 = vunpack.c.l.b16 %v140
    %v442 = vunpack.c.l.b16 %v141
    %v443 = vunpack.c.l.b16 %v142
    %v444 = vunpack.c.l.b16 %v143
    %v445 = vunpack.c.l.b16 %v144
    %v446 = vpack.c.b16 %v431, %v430
    %v447 = vpack.c.b16 %v433, %v432
    %v448 = vpack.c.b16 %v435, %v434
    %v449 = vpack.c.b16 %v437, %v436
    %v450 = vpack.c.b16 %v439, %v438
    %v451 = vpack.c.b16 %v441, %v440
    %v452 = vpack.c.b16 %v443, %v442
    %v453 = vpack.c.b16 %v445, %v444
    %462 = vmatprep.subr.bf16.mxu0 0
    %463 = vmatpush1.bf16.msra.mxu0 %v453
    %464 = vmatprep.subr.bf16.mxu0 0
    %465 = vmatpush1.bf16.msra.mxu0 %v452
    %466 = vmatprep.subr.bf16.mxu0 0
    %467 = vmatpush1.bf16.msra.mxu0 %v451
    %468 = vmatprep.subr.bf16.mxu0 0
    %469 = vmatpush1.bf16.msra.mxu0 %v450
    %470 = vmatprep.subr.bf16.mxu0 0
    %471 = vmatpush1.bf16.msra.mxu0 %v449
    %472 = vmatprep.subr.bf16.mxu0 0
    %473 = vmatpush1.bf16.msra.mxu0 %v448
    %474 = vmatprep.subr.bf16.mxu0 0
    %475 = vmatpush1.bf16.msra.mxu0 %v447
    %476 = vmatprep.subr.bf16.mxu0 0
    %477 = vmatpush1.bf16.msra.mxu0 %v446
    %478 = vmatprep.subr.bf16.mxu0 0
    %479 = vmatpush2.bf16.msra.mxu0 0
    %480 = vmatprep.subr.bf16.mxu0 0
    %481 = vmatpush2.bf16.msra.mxu0 0
    %482 = vmatprep.subr.bf16.mxu0 0
    %483 = vmatpush2.bf16.msra.mxu0 0
    %484 = vmatprep.subr.bf16.mxu0 0
    %485 = vmatpush2.bf16.msra.mxu0 0
    %486 = vmatprep.subr.bf16.mxu0 0
    %487 = vmatpush2.bf16.msra.mxu0 0
    %488 = vmatprep.subr.bf16.mxu0 0
    %489 = vmatpush2.bf16.msra.mxu0 0
    %490 = vmatprep.subr.bf16.mxu0 0
    %491 = vmatpush2.bf16.msra.mxu0 0
    %492 = vmatprep.subr.bf16.mxu0 0
    %493 = vmatpush2.bf16.msra.mxu0 0
    %494 = vmatprep.mubr.bf16.mxu0 0
    %495 = vmatmul.mubr.bf16.gmra.mxu0 %v412
    %v496 = vpop.f32.mrf.mxu0
    %v497 = vadd.f32 0.0, %v496
    %v498 = vpop.f32.mrf.mxu0
    %v499 = vpop.f32.mrf.mxu0
    %v500 = vadd.f32 0.0, %v499
    %v501 = vpop.f32.mrf.mxu0
    %502 = vmatprep.mubr.bf16.mxu0 0
    %503 = vmatmul.mubr.bf16.gmra.mxu0 %v413
    %v504 = vpop.f32.mrf.mxu0
    %v505 = vadd.f32 0.0, %v504
    %v506 = vpop.f32.mrf.mxu0
    %v507 = vpop.f32.mrf.mxu0
    %v508 = vadd.f32 0.0, %v507
    %v509 = vpop.f32.mrf.mxu0
    %510 = vdwg.mxu0
    %v511 = vpack.c.bf16 %v500, %v497
    %v512 = vpack.c.bf16 %v508, %v505
    %513 = vmatprep.subr.bf16.mxu0 0
    %514 = vmatpush1.bf16.msra.mxu0 0
    %515 = vmatprep.subr.bf16.mxu0 0
    %516 = vmatpush1.bf16.msra.mxu0 0
    %517 = vmatprep.subr.bf16.mxu0 0
    %518 = vmatpush1.bf16.msra.mxu0 0
    %519 = vmatprep.subr.bf16.mxu0 0
    %520 = vmatpush1.bf16.msra.mxu0 0
    %521 = vmatprep.subr.bf16.mxu0 0
    %522 = vmatpush1.bf16.msra.mxu0 0
    %523 = vmatprep.subr.bf16.mxu0 0
    %524 = vmatpush1.bf16.msra.mxu0 0
    %525 = vmatprep.subr.bf16.mxu0 0
    %526 = vmatpush1.bf16.msra.mxu0 0
    %527 = vmatprep.subr.bf16.mxu0 0
    %528 = vmatpush1.bf16.msra.mxu0 %v511
    %529 = vmatprep.subr.bf16.mxu0 0
    %530 = vmatpush2.bf16.msra.mxu0 0
    %531 = vmatprep.subr.bf16.mxu0 0
    %532 = vmatpush2.bf16.msra.mxu0 0
    %533 = vmatprep.subr.bf16.mxu0 0
    %534 = vmatpush2.bf16.msra.mxu0 0
    %535 = vmatprep.subr.bf16.mxu0 0
    %536 = vmatpush2.bf16.msra.mxu0 0
    %537 = vmatprep.subr.bf16.mxu0 0
    %538 = vmatpush2.bf16.msra.mxu0 0
    %539 = vmatprep.subr.bf16.mxu0 0
    %540 = vmatpush2.bf16.msra.mxu0 0
    %541 = vmatprep.subr.bf16.mxu0 0
    %542 = vmatpush2.bf16.msra.mxu0 0
    %543 = vmatprep.subr.bf16.mxu0 0
    %544 = vmatpush2.bf16.msra.mxu0 0
    %545 = vmatprep.mubr.bf16.mxu0 0
    %546 = vmatmul.mubr.bf16.gmra.mxu0 %v306
    %v547 = vpop.f32.mrf.mxu0
    %v548 = vadd.f32 0.0, %v547
    %v549 = vpop.f32.mrf.mxu0
    %v550 = vpop.f32.mrf.mxu0
    %v551 = vadd.f32 0.0, %v550
    %v552 = vpop.f32.mrf.mxu0
    %553 = vdwg.mxu0
    %554 = vmatprep.subr.bf16.mxu0 0
    %555 = vmatpush1.bf16.msra.mxu0 0
    %556 = vmatprep.subr.bf16.mxu0 0
    %557 = vmatpush1.bf16.msra.mxu0 0
    %558 = vmatprep.subr.bf16.mxu0 0
    %559 = vmatpush1.bf16.msra.mxu0 0
    %560 = vmatprep.subr.bf16.mxu0 0
    %561 = vmatpush1.bf16.msra.mxu0 0
    %562 = vmatprep.subr.bf16.mxu0 0
    %563 = vmatpush1.bf16.msra.mxu0 0
    %564 = vmatprep.subr.bf16.mxu0 0
    %565 = vmatpush1.bf16.msra.mxu0 0
    %566 = vmatprep.subr.bf16.mxu0 0
    %567 = vmatpush1.bf16.msra.mxu0 0
    %568 = vmatprep.subr.bf16.mxu0 0
    %569 = vmatpush1.bf16.msra.mxu0 %v512
    %570 = vmatprep.subr.bf16.mxu0 0
    %571 = vmatpush2.bf16.msra.mxu0 0
    %572 = vmatprep.subr.bf16.mxu0 0
    %573 = vmatpush2.bf16.msra.mxu0 0
    %574 = vmatprep.subr.bf16.mxu0 0
    %575 = vmatpush2.bf16.msra.mxu0 0
    %576 = vmatprep.subr.bf16.mxu0 0
    %577 = vmatpush2.bf16.msra.mxu0 0
    %578 = vmatprep.subr.bf16.mxu0 0
    %579 = vmatpush2.bf16.msra.mxu0 0
    %580 = vmatprep.subr.bf16.mxu0 0
    %581 = vmatpush2.bf16.msra.mxu0 0
    %582 = vmatprep.subr.bf16.mxu0 0
    %583 = vmatpush2.bf16.msra.mxu0 0
    %584 = vmatprep.subr.bf16.mxu0 0
    %585 = vmatpush2.bf16.msra.mxu0 0
    %586 = vmatprep.mubr.bf16.mxu0 0
    %587 = vmatmul.mubr.bf16.gmra.mxu0 %v355
    %v588 = vpop.f32.mrf.mxu0
    %v589 = vadd.f32 0.0, %v588
    %v590 = vpop.f32.mrf.mxu0
    %v591 = vpop.f32.mrf.mxu0
    %v592 = vadd.f32 0.0, %v591
    %v593 = vpop.f32.mrf.mxu0
    %594 = vdwg.mxu0
    %v596 = vlaneseq
    %v597 = vshrl.u32 %v596, 7
    %v598 = vsub.s32 0, %v597
    %v599 = vrot.slane %v194, %v598
    %v601 = vadd.f32 %v548, %v599
    %v602 = vadd.f32 %v551, %v599
    %v603 = vadd.f32 %v589, %v599
    %v604 = vadd.f32 %v592, %v599
    %v605 = vmax.f32 %v601, 0.0
    %v606 = vmax.f32 %v602, 0.0
    %v607 = vmax.f32 %v603, 0.0
    %v608 = vmax.f32 %v604, 0.0
    %v609 = vadd.f32 %v109, %v110
    %v610 = vadd.f32 %v609, %v111
    %v611 = vadd.f32 %v610, %v112
    %v612 = vrot.slane %v611, 4
    %v613 = vadd.f32 %v611, %v612
    %v614 = vrot.slane %v613, 2
    %v615 = vadd.f32 %v613, %v614
    %v616 = vrot.slane %v615, 1
    %v617 = vadd.f32 %v615, %v616
    %v618 = vadd.f32 %v408, %v409
    %v619 = vadd.f32 %v618, %v410
    %v620 = vadd.f32 %v619, %v411
    %v621 = vrot.slane %v620, 4
    %v622 = vadd.f32 %v620, %v621
    %v623 = vrot.slane %v622, 2
    %v624 = vadd.f32 %v622, %v623
    %v625 = vrot.slane %v624, 1
    %v626 = vadd.f32 %v624, %v625
    %v627 = vadd.f32 %v605, %v606
    %v628 = vadd.f32 %v627, %v607
    %v629 = vadd.f32 %v628, %v608
    %v630 = vrot.slane %v629, 4
    %v631 = vadd.f32 %v629, %v630
    %v632 = vrot.slane %v631, 2
    %v633 = vadd.f32 %v631, %v632
    %v634 = vrot.slane %v633, 1
    %v635 = vadd.f32 %v633, %v634
    %v636 = vmul.f32 %v617, 0.03125
    %v637 = vmul.f32 %v626, 0.03125
    %v638 = vmul.f32 %v635, 0.03125
    %v639 = vmul.f32 %v109, %v109
    %v640 = vmul.f32 %v408, %v408
    %v641 = vmul.f32 %v605, %v605
    %v642 = vmul.f32 %v110, %v110
    %v643 = vmul.f32 %v409, %v409
    %v644 = vmul.f32 %v606, %v606
    %v645 = vmul.f32 %v111, %v111
    %v646 = vmul.f32 %v410, %v410
    %v647 = vmul.f32 %v607, %v607
    %v648 = vmul.f32 %v112, %v112
    %v649 = vmul.f32 %v411, %v411
    %v650 = vmul.f32 %v608, %v608
    %v651 = vadd.f32 %v639, %v642
    %v652 = vadd.f32 %v651, %v645
    %v653 = vadd.f32 %v652, %v648
    %v654 = vrot.slane %v653, 4
    %v655 = vadd.f32 %v653, %v654
    %v656 = vrot.slane %v655, 2
    %v657 = vadd.f32 %v655, %v656
    %v658 = vrot.slane %v657, 1
    %v659 = vadd.f32 %v657, %v658
    %v660 = vadd.f32 %v640, %v643
    %v661 = vadd.f32 %v660, %v646
    %v662 = vadd.f32 %v661, %v649
    %v663 = vrot.slane %v662, 4
    %v664 = vadd.f32 %v662, %v663
    %v665 = vrot.slane %v664, 2
    %v666 = vadd.f32 %v664, %v665
    %v667 = vrot.slane %v666, 1
    %v668 = vadd.f32 %v666, %v667
    %v669 = vadd.f32 %v641, %v644
    %v670 = vadd.f32 %v669, %v647
    %v671 = vadd.f32 %v670, %v650
    %v672 = vrot.slane %v671, 4
    %v673 = vadd.f32 %v671, %v672
    %v674 = vrot.slane %v673, 2
    %v675 = vadd.f32 %v673, %v674
    %v676 = vrot.slane %v675, 1
    %v677 = vadd.f32 %v675, %v676
    %v678 = vmul.f32 %v659, 0.03125
    %v679 = vmul.f32 %v668, 0.03125
    %v680 = vmul.f32 %v677, 0.03125
    %v681 = vmul.f32 %v636, %v636
    %v682 = vmul.f32 %v637, %v637
    %v683 = vmul.f32 %v638, %v638
    %v684 = vsub.f32 %v678, %v681
    %v685 = vsub.f32 %v679, %v682
    %v686 = vsub.f32 %v680, %v683
    %v687 = vadd.f32 %v684, 1e-05
    %v688 = vadd.f32 %v685, 1e-05
    %v689 = vadd.f32 %v686, 1e-05
    %v690 = vrsqrt.pop %v687
    %v691 = vrsqrt.pop %v688
    %v692 = vrsqrt.pop %v689
    %v694 = vlaneseq
    %v695 = vshrl.u32 %v694, 7
    %v696 = vsub.s32 0, %v695
    %v697 = vrot.slane %v196, %v696
    %v698 = vlaneseq
    %v699 = vshrl.u32 %v698, 7
    %v700 = vsub.s32 1, %v699
    %v701 = vrot.slane %v196, %v700
    %v702 = vlaneseq
    %v703 = vshrl.u32 %v702, 7
    %v704 = vsub.s32 2, %v703
    %v705 = vrot.slane %v196, %v704
    %v709 = vmul.f32 %v690, %v697
    %v710 = vmul.f32 %v691, %v701
    %v711 = vmul.f32 %v692, %v705
    %v712 = vmul.f32 %v636, %v709
    %v713 = vmul.f32 %v637, %v710
    %v714 = vmul.f32 %v638, %v711
    %v718 = vcombine.low %v712, %v713
    %v720 = vunpack.c.l.s4 1966171168
    %v721 = vunpack.c.0.s8 %v720
    %v722 = vlaneseq
    %v723 = vshrl.u32 %v722, 7
    %v724 = vsub.s32 %v721, %v723
    %v725 = vrot.slane %v718, %v724
    %v727 = vunpack.c.l.s4 1966171168
    %v728 = vunpack.c.0.s8 %v727
    %v729 = vlaneseq
    %v730 = vshrl.u32 %v729, 7
    %v731 = vsub.s32 %v728, %v730
    %v732 = vrot.slane %v714, %v731
    %v733 = vcombine.low %v725, %v732
    %v735 = vunpack.c.l.s4 1966171168
    %v736 = vunpack.c.0.s8 %v735
    %v737 = vlaneseq
    %v738 = vshrl.u32 %v737, 7
    %v739 = vsub.s32 %v736, %v738
    %v740 = vrot.slane %v733, %v739
    %v742 = vsub.f32 %v197, %v740
    %v743 = vlaneseq
    %v744 = vshrl.u32 %v743, 7
    %v745 = vsub.s32 0, %v744
    %v746 = vrot.slane %v709, %v745
    %v747 = vlaneseq
    %v748 = vshrl.u32 %v747, 7
    %v749 = vsub.s32 0, %v748
    %v750 = vrot.slane %v710, %v749
    %v751 = vlaneseq
    %v752 = vshrl.u32 %v751, 7
    %v753 = vsub.s32 0, %v752
    %v754 = vrot.slane %v711, %v753
    %v755 = vmul.f32 %v109, %v746
    %v756 = vmul.f32 %v408, %v750
    %v757 = vmul.f32 %v605, %v754
    %v758 = vmul.f32 %v110, %v746
    %v759 = vmul.f32 %v409, %v750
    %v760 = vmul.f32 %v606, %v754
    %v761 = vmul.f32 %v111, %v746
    %v762 = vmul.f32 %v410, %v750
    %v763 = vmul.f32 %v607, %v754
    %v764 = vmul.f32 %v112, %v746
    %v765 = vmul.f32 %v411, %v750
    %v766 = vmul.f32 %v608, %v754
    %v767 = vpack.c.bf16 %v758, %v755
    %v768 = vpack.c.bf16 %v759, %v756
    %v769 = vpack.c.bf16 %v760, %v757
    %v770 = vpack.c.bf16 %v764, %v761
    %v771 = vpack.c.bf16 %v765, %v762
    %v772 = vpack.c.bf16 %v766, %v763
    %v774 = vlaneseq
    %v775 = vshrl.u32 %v774, 7
    %v776 = vsub.s32 0, %v775
    %v777 = vrot.slane %v742, %v776
    %v778 = vlaneseq
    %v779 = vshrl.u32 %v778, 7
    %v780 = vsub.s32 1, %v779
    %v781 = vrot.slane %v742, %v780
    %v782 = vlaneseq
    %v783 = vshrl.u32 %v782, 7
    %v784 = vsub.s32 2, %v783
    %v785 = vrot.slane %v742, %v784
    %v789 = vpack.c.bf16 %v777, %v777
    %v790 = vpack.c.bf16 %v781, %v781
    %v791 = vpack.c.bf16 %v785, %v785
    %v840 = vunpack.c.l.b16 %v145
    %v841 = vunpack.c.l.b16 %v146
    %v842 = vunpack.c.l.b16 %v147
    %v843 = vunpack.c.l.b16 %v148
    %v844 = vunpack.c.l.b16 %v149
    %v845 = vunpack.c.l.b16 %v150
    %v846 = vunpack.c.l.b16 %v151
    %v847 = vunpack.c.l.b16 %v152
    %v848 = vunpack.c.l.b16 %v153
    %v849 = vunpack.c.l.b16 %v154
    %v850 = vunpack.c.l.b16 %v155
    %v851 = vunpack.c.l.b16 %v156
    %v852 = vunpack.c.l.b16 %v157
    %v853 = vunpack.c.l.b16 %v158
    %v854 = vunpack.c.l.b16 %v159
    %v855 = vunpack.c.l.b16 %v160
    %v856 = vunpack.c.l.b16 %v161
    %v857 = vunpack.c.l.b16 %v162
    %v858 = vunpack.c.l.b16 %v163
    %v859 = vunpack.c.l.b16 %v164
    %v860 = vunpack.c.l.b16 %v165
    %v861 = vunpack.c.l.b16 %v166
    %v862 = vunpack.c.l.b16 %v167
    %v863 = vunpack.c.l.b16 %v168
    %v864 = vunpack.c.l.b16 %v169
    %v865 = vunpack.c.l.b16 %v170
    %v866 = vunpack.c.l.b16 %v171
    %v867 = vunpack.c.l.b16 %v172
    %v868 = vunpack.c.l.b16 %v173
    %v869 = vunpack.c.l.b16 %v174
    %v870 = vunpack.c.l.b16 %v175
    %v871 = vunpack.c.l.b16 %v176
    %v872 = vunpack.c.l.b16 %v177
    %v873 = vunpack.c.l.b16 %v178
    %v874 = vunpack.c.l.b16 %v179
    %v875 = vunpack.c.l.b16 %v180
    %v876 = vunpack.c.l.b16 %v181
    %v877 = vunpack.c.l.b16 %v182
    %v878 = vunpack.c.l.b16 %v183
    %v879 = vunpack.c.l.b16 %v184
    %v880 = vunpack.c.l.b16 %v185
    %v881 = vunpack.c.l.b16 %v186
    %v882 = vunpack.c.l.b16 %v187
    %v883 = vunpack.c.l.b16 %v188
    %v884 = vunpack.c.l.b16 %v189
    %v885 = vunpack.c.l.b16 %v190
    %v886 = vunpack.c.l.b16 %v191
    %v887 = vunpack.c.l.b16 %v192
    %v888 = vpack.c.b16 %v841, %v840
    %v889 = vpack.c.b16 %v843, %v842
    %v890 = vpack.c.b16 %v845, %v844
    %v891 = vpack.c.b16 %v847, %v846
    %v892 = vpack.c.b16 %v849, %v848
    %v893 = vpack.c.b16 %v851, %v850
    %v894 = vpack.c.b16 %v853, %v852
    %v895 = vpack.c.b16 %v855, %v854
    %v896 = vpack.c.b16 %v857, %v856
    %v897 = vpack.c.b16 %v859, %v858
    %v898 = vpack.c.b16 %v861, %v860
    %v899 = vpack.c.b16 %v863, %v862
    %v900 = vpack.c.b16 %v865, %v864
    %v901 = vpack.c.b16 %v867, %v866
    %v902 = vpack.c.b16 %v869, %v868
    %v903 = vpack.c.b16 %v871, %v870
    %v904 = vpack.c.b16 %v873, %v872
    %v905 = vpack.c.b16 %v875, %v874
    %v906 = vpack.c.b16 %v877, %v876
    %v907 = vpack.c.b16 %v879, %v878
    %v908 = vpack.c.b16 %v881, %v880
    %v909 = vpack.c.b16 %v883, %v882
    %v910 = vpack.c.b16 %v885, %v884
    %v911 = vpack.c.b16 %v887, %v886
    %936 = vmatprep.subr.bf16.mxu0 0
    %937 = vmatpush1.bf16.msra.mxu0 %v895
    %938 = vmatprep.subr.bf16.mxu0 0
    %939 = vmatpush1.bf16.msra.mxu0 %v894
    %940 = vmatprep.subr.bf16.mxu0 0
    %941 = vmatpush1.bf16.msra.mxu0 %v893
    %942 = vmatprep.subr.bf16.mxu0 0
    %943 = vmatpush1.bf16.msra.mxu0 %v892
    %944 = vmatprep.subr.bf16.mxu0 0
    %945 = vmatpush1.bf16.msra.mxu0 %v891
    %946 = vmatprep.subr.bf16.mxu0 0
    %947 = vmatpush1.bf16.msra.mxu0 %v890
    %948 = vmatprep.subr.bf16.mxu0 0
    %949 = vmatpush1.bf16.msra.mxu0 %v889
    %950 = vmatprep.subr.bf16.mxu0 0
    %951 = vmatpush1.bf16.msra.mxu0 %v888
    %952 = vmatprep.subr.bf16.mxu0 0
    %953 = vmatpush2.bf16.msra.mxu0 %v903
    %954 = vmatprep.subr.bf16.mxu0 0
    %955 = vmatpush2.bf16.msra.mxu0 %v902
    %956 = vmatprep.subr.bf16.mxu0 0
    %957 = vmatpush2.bf16.msra.mxu0 %v901
    %958 = vmatprep.subr.bf16.mxu0 0
    %959 = vmatpush2.bf16.msra.mxu0 %v900
    %960 = vmatprep.subr.bf16.mxu0 0
    %961 = vmatpush2.bf16.msra.mxu0 %v899
    %962 = vmatprep.subr.bf16.mxu0 0
    %963 = vmatpush2.bf16.msra.mxu0 %v898
    %964 = vmatprep.subr.bf16.mxu0 0
    %965 = vmatpush2.bf16.msra.mxu0 %v897
    %966 = vmatprep.subr.bf16.mxu0 0
    %967 = vmatpush2.bf16.msra.mxu0 %v896
    %968 = vmatprep.mubr.bf16.mxu0 %v790
    %969 = vmatmul.mubr.bf16.gmra.mxu0 %v789
    %v970 = vpop.f32.mrf.mxu0
    %v971 = vadd.f32 %v195, %v970
    %v972 = vpop.f32.mrf.mxu0
    %v973 = vpop.f32.mrf.mxu0
    %v974 = vpop.f32.mrf.mxu0
    %975 = vdwg.mxu0
    %976 = vmatprep.subr.bf16.mxu0 0
    %977 = vmatpush1.bf16.msra.mxu0 %v911
    %978 = vmatprep.subr.bf16.mxu0 0
    %979 = vmatpush1.bf16.msra.mxu0 %v910
    %980 = vmatprep.subr.bf16.mxu0 0
    %981 = vmatpush1.bf16.msra.mxu0 %v909
    %982 = vmatprep.subr.bf16.mxu0 0
    %983 = vmatpush1.bf16.msra.mxu0 %v908
    %984 = vmatprep.subr.bf16.mxu0 0
    %985 = vmatpush1.bf16.msra.mxu0 %v907
    %986 = vmatprep.subr.bf16.mxu0 0
    %987 = vmatpush1.bf16.msra.mxu0 %v906
    %988 = vmatprep.subr.bf16.mxu0 0
    %989 = vmatpush1.bf16.msra.mxu0 %v905
    %990 = vmatprep.subr.bf16.mxu0 0
    %991 = vmatpush1.bf16.msra.mxu0 %v904
    %992 = vmatprep.subr.bf16.mxu0 0
    %993 = vmatpush2.bf16.msra.mxu0 0
    %994 = vmatprep.subr.bf16.mxu0 0
    %995 = vmatpush2.bf16.msra.mxu0 0
    %996 = vmatprep.subr.bf16.mxu0 0
    %997 = vmatpush2.bf16.msra.mxu0 0
    %998 = vmatprep.subr.bf16.mxu0 0
    %999 = vmatpush2.bf16.msra.mxu0 0
    %1000 = vmatprep.subr.bf16.mxu0 0
    %1001 = vmatpush2.bf16.msra.mxu0 0
    %1002 = vmatprep.subr.bf16.mxu0 0
    %1003 = vmatpush2.bf16.msra.mxu0 0
    %1004 = vmatprep.subr.bf16.mxu0 0
    %1005 = vmatpush2.bf16.msra.mxu0 0
    %1006 = vmatprep.subr.bf16.mxu0 0
    %1007 = vmatpush2.bf16.msra.mxu0 0
    %1008 = vmatprep.mubr.bf16.mxu0 0
    %1009 = vmatmul.mubr.bf16.gmra.mxu0 %v791
    %v1010 = vpop.f32.mrf.mxu0
    %v1011 = vadd.f32 %v971, %v1010
    %v1012 = vpop.f32.mrf.mxu0
    %v1013 = vpop.f32.mrf.mxu0
    %v1014 = vpop.f32.mrf.mxu0
    %1015 = vdwg.mxu0
    %v1016 = vlaneseq
    %v1017 = vshrl.u32 %v1016, 7
    %v1018 = vsub.s32 0, %v1017
    %v1019 = vrot.slane %v1011, %v1018
    %1020 = vmatprep.subr.bf16.mxu0 0
    %1021 = vmatpush1.bf16.msra.mxu0 %v895
    %1022 = vmatprep.subr.bf16.mxu0 0
    %1023 = vmatpush1.bf16.msra.mxu0 %v894
    %1024 = vmatprep.subr.bf16.mxu0 0
    %1025 = vmatpush1.bf16.msra.mxu0 %v893
    %1026 = vmatprep.subr.bf16.mxu0 0
    %1027 = vmatpush1.bf16.msra.mxu0 %v892
    %1028 = vmatprep.subr.bf16.mxu0 0
    %1029 = vmatpush1.bf16.msra.mxu0 %v891
    %1030 = vmatprep.subr.bf16.mxu0 0
    %1031 = vmatpush1.bf16.msra.mxu0 %v890
    %1032 = vmatprep.subr.bf16.mxu0 0
    %1033 = vmatpush1.bf16.msra.mxu0 %v889
    %1034 = vmatprep.subr.bf16.mxu0 0
    %1035 = vmatpush1.bf16.msra.mxu0 %v888
    %1036 = vmatprep.subr.bf16.mxu0 0
    %1037 = vmatpush2.bf16.msra.mxu0 %v903
    %1038 = vmatprep.subr.bf16.mxu0 0
    %1039 = vmatpush2.bf16.msra.mxu0 %v902
    %1040 = vmatprep.subr.bf16.mxu0 0
    %1041 = vmatpush2.bf16.msra.mxu0 %v901
    %1042 = vmatprep.subr.bf16.mxu0 0
    %1043 = vmatpush2.bf16.msra.mxu0 %v900
    %1044 = vmatprep.subr.bf16.mxu0 0
    %1045 = vmatpush2.bf16.msra.mxu0 %v899
    %1046 = vmatprep.subr.bf16.mxu0 0
    %1047 = vmatpush2.bf16.msra.mxu0 %v898
    %1048 = vmatprep.subr.bf16.mxu0 0
    %1049 = vmatpush2.bf16.msra.mxu0 %v897
    %1050 = vmatprep.subr.bf16.mxu0 0
    %1051 = vmatpush2.bf16.msra.mxu0 %v896
    %1052 = vmatprep.mubr.bf16.mxu0 %v768
    %1053 = vmatmul.mubr.bf16.gmra.mxu0 %v767
    %v1054 = vpop.f32.mrf.mxu0
    %v1055 = vadd.f32 %v1019, %v1054
    %v1056 = vpop.f32.mrf.mxu0
    %v1057 = vpop.f32.mrf.mxu0
    %v1058 = vadd.f32 %v1019, %v1057
    %v1059 = vpop.f32.mrf.mxu0
    %1060 = vmatprep.mubr.bf16.mxu0 %v771
    %1061 = vmatmul.mubr.bf16.gmra.mxu0 %v770
    %v1062 = vpop.f32.mrf.mxu0
    %v1063 = vadd.f32 %v1019, %v1062
    %v1064 = vpop.f32.mrf.mxu0
    %v1065 = vpop.f32.mrf.mxu0
    %v1066 = vadd.f32 %v1019, %v1065
    %v1067 = vpop.f32.mrf.mxu0
    %1068 = vdwg.mxu0
    %1069 = vmatprep.subr.bf16.mxu0 0
    %1070 = vmatpush1.bf16.msra.mxu0 %v911
    %1071 = vmatprep.subr.bf16.mxu0 0
    %1072 = vmatpush1.bf16.msra.mxu0 %v910
    %1073 = vmatprep.subr.bf16.mxu0 0
    %1074 = vmatpush1.bf16.msra.mxu0 %v909
    %1075 = vmatprep.subr.bf16.mxu0 0
    %1076 = vmatpush1.bf16.msra.mxu0 %v908
    %1077 = vmatprep.subr.bf16.mxu0 0
    %1078 = vmatpush1.bf16.msra.mxu0 %v907
    %1079 = vmatprep.subr.bf16.mxu0 0
    %1080 = vmatpush1.bf16.msra.mxu0 %v906
    %1081 = vmatprep.subr.bf16.mxu0 0
    %1082 = vmatpush1.bf16.msra.mxu0 %v905
    %1083 = vmatprep.subr.bf16.mxu0 0
    %1084 = vmatpush1.bf16.msra.mxu0 %v904
    %1085 = vmatprep.subr.bf16.mxu0 0
    %1086 = vmatpush2.bf16.msra.mxu0 0
    %1087 = vmatprep.subr.bf16.mxu0 0
    %1088 = vmatpush2.bf16.msra.mxu0 0
    %1089 = vmatprep.subr.bf16.mxu0 0
    %1090 = vmatpush2.bf16.msra.mxu0 0
    %1091 = vmatprep.subr.bf16.mxu0 0
    %1092 = vmatpush2.bf16.msra.mxu0 0
    %1093 = vmatprep.subr.bf16.mxu0 0
    %1094 = vmatpush2.bf16.msra.mxu0 0
    %1095 = vmatprep.subr.bf16.mxu0 0
    %1096 = vmatpush2.bf16.msra.mxu0 0
    %1097 = vmatprep.subr.bf16.mxu0 0
    %1098 = vmatpush2.bf16.msra.mxu0 0
    %1099 = vmatprep.subr.bf16.mxu0 0
    %1100 = vmatpush2.bf16.msra.mxu0 0
    %1101 = vmatprep.mubr.bf16.mxu0 0
    %1102 = vmatmul.mubr.bf16.gmra.mxu0 %v769
    %v1103 = vpop.f32.mrf.mxu0
    %v1104 = vadd.f32 %v1055, %v1103
    %v1105 = vpop.f32.mrf.mxu0
    %v1106 = vpop.f32.mrf.mxu0
    %v1107 = vadd.f32 %v1058, %v1106
    %v1108 = vpop.f32.mrf.mxu0
    %1109 = vmatprep.mubr.bf16.mxu0 0
    %1110 = vmatmul.mubr.bf16.gmra.mxu0 %v772
    %v1111 = vpop.f32.mrf.mxu0
    %v1112 = vadd.f32 %v1063, %v1111
    %v1113 = vpop.f32.mrf.mxu0
    %v1114 = vpop.f32.mrf.mxu0
    %v1115 = vadd.f32 %v1066, %v1114
    %v1116 = vpop.f32.mrf.mxu0
    %1117 = vdwg.mxu0
    %1118 = vst [vmem:[#allocation11] sm:$0xff] %v1104
    %1119 = vst [vmem:[#allocation11 + $0x8] sm:$0xff] %v1107
    %1120 = vst [vmem:[#allocation11 + $0x10] sm:$0xff] %v1112
    %1121 = vst [vmem:[#allocation11 + $0x18] sm:$0xff] %v1115
    // Predicated region
    $region62: #{tpu_custom_call.1} parent=1 // pred_check
      _
    $region63: #{tpu_custom_call.1} parent=1 // pred_check_branch
      %1123 = sbr.rel (0) target = $region65
    $region64: #{tpu_custom_call.1} parent=1 // pred_region
      %s1125 = ssub.s32 512, 512
      %1126 = vsyncadd [#allocation4], %s1125
      %s1127 = sshll.u32 [#allocation11], 4
      %s1128 = int_to_ptr.vmem [resolvable:$true] %s1127
      %1133 = dma.vmem_to_hbm [thread:$0]  %s1128, 512, %s10, [#allocation4], 128, 128, 8
    $region65: #{tpu_custom_call.1} parent=1 // pred_fallthru
      _
    // Predicated region
    $region66: #{tpu_custom_call.1} parent=1 // pred_check
      _
    $region67: #{tpu_custom_call.1} parent=1 // pred_check_branch
      %1135 = sbr.rel (0) target = $region69
    $region68: #{tpu_custom_call.1} parent=1 // pred_region
      %1136 = dma.done [#allocation4], 512
    $region69: #{tpu_custom_call.1} parent=1 // pred_fallthru
      _
    %1137 = vsyncpa [#allocation3], 1
    %1138 = vsyncpa [#allocation6], 1
    %1139 = vsyncpa [#allocation9], 1
    %1140 = vsyncpa [#allocation4], 1

// kernel: tpu_custom_call.1
$region0: #{tpu_custom_call.1}
  #allocation0 [shape = 'u32[]', space=smem, size = 0x4, offset = 0x4, fixed_abs, tag = 'smem constant byte address 0x4 - core index']
  #allocation1 [shape = 'u32[144,128]{1,0:T(1,128)}', space=vmem, size = 0x12000, scoped, tag = 'internal scratch']
  %s0 = inlined_call_operand.hbm [shape: bf16[2,16,16], index: 0, kind: input, shape index: {}]
  %s1 = inlined_call_operand.hbm [shape: f32[2,16,128], index: 1, kind: input, shape index: {}]
  %s2 = inlined_call_operand.hbm [shape: bf16[128,128], index: 2, kind: input, shape index: {}]
  %s3 = inlined_call_operand.vmem [shape: f32[1,128], index: 3, kind: input, shape index: {}]
  %s4 = inlined_call_operand.hbm [shape: bf16[128,128], index: 4, kind: input, shape index: {}]
  %s5 = inlined_call_operand.vmem [shape: f32[1,128], index: 5, kind: input, shape index: {}]
  %s6 = inlined_call_operand.vmem [shape: f32[1,384], index: 6, kind: input, shape index: {}]
  %s7 = inlined_call_operand.vmem [shape: f32[1,384], index: 7, kind: input, shape index: {}]
  %s8 = inlined_call_operand.hbm [shape: bf16[384,128], index: 8, kind: input, shape index: {}]
  %s9 = inlined_call_operand.vmem [shape: f32[1,128], index: 9, kind: input, shape index: {}]
  %s10 = inlined_call_operand.hbm [shape: f32[2,16,128], index: 10, kind: output, shape index: {}]
  %s11 = sld [smem:[#allocation0]]
  $region70: #{tpu_custom_call.1} parent=0
    _
  %s13 = ssub.s32 1, %s11
  %s14 = scalar_select 0, %s13, %s11
  $region1: #{tpu_custom_call.1} parent=0
    #allocation2 [shape = 'u8[8192]{0}', space=vmem, size = 0x2000, scoped, tag = 'input window, operand 0, single buffered']
    #allocation3 [shape = 's32[1]{0}', space=sflag, size = 0x4, scoped, tag = 'scoped memory for tpu_custom_call.1']
    #allocation4 [shape = 's32[1]{0}', space=sflag, size = 0x4, scoped, tag = 'scoped memory for tpu_custom_call.1']
    #allocation5 [shape = 'u8[16384]{0}', space=vmem, size = 0x4000, scoped, tag = 'input window, operand 1, single buffered']
    #allocation6 [shape = 's32[1]{0}', space=sflag, size = 0x4, scoped, tag = 'scoped memory for tpu_custom_call.1']
    #allocation7 [shape = 'u8[32768]{0}', space=vmem, size = 0x8000, scoped, tag = 'input window, operand 2, single buffered']
    #allocation8 [shape = 'u8[32768]{0}', space=vmem, size = 0x8000, scoped, tag = 'input window, operand 4, single buffered']
    #allocation9 [shape = 's32[1]{0}', space=sflag, size = 0x4, scoped, tag = 'scoped memory for tpu_custom_call.1']
    #allocation10 [shape = 'u8[98304]{0}', space=vmem, size = 0x18000, scoped, tag = 'input window, operand 8, single buffered']
    #allocation11 [shape = 'u8[16384]{0}', space=vmem, size = 0x4000, scoped, tag = 'output window, operand 0, single buffered']
    %15 = vsyncpa [#allocation3], 0
    %16 = vsyncpa [#allocation6], 0
    %17 = vsyncpa [#allocation9], 0
    %18 = vsyncpa [#allocation4], 0
    // Predicated region
    $region2: #{tpu_custom_call.1} parent=1 // pred_check
      _
    $region3: #{tpu_custom_call.1} parent=1 // pred_check_branch
      %20 = sbr.rel (0) target = $region5
    $region4: #{tpu_custom_call.1} parent=1 // pred_region
      %s22 = ssub.s32 256, 256
      %23 = vsyncadd [#allocation3], %s22
      %s24 = sshll.u32 [#allocation2], 4
      %s25 = int_to_ptr.vmem [resolvable:$true] %s24
      %30 = dma.hbm_to_vmem [thread:$0]  %s0, 256, %s25, [#allocation3], 64, 64, 4
    $region5: #{tpu_custom_call.1} parent=1 // pred_fallthru
      _
    // Predicated region
    $region6: #{tpu_custom_call.1} parent=1 // pred_check
      _
    $region7: #{tpu_custom_call.1} parent=1 // pred_check_branch
      %32 = sbr.rel (0) target = $region9
    $region8: #{tpu_custom_call.1} parent=1 // pred_region
      %s34 = ssub.s32 512, 512
      %35 = vsyncadd [#allocation6], %s34
      %s36 = sshll.u32 [#allocation5], 4
      %s37 = int_to_ptr.vmem [resolvable:$true] %s36
      %42 = dma.hbm_to_vmem [thread:$0]  %s1, 512, %s37, [#allocation6], 128, 128, 8
    $region9: #{tpu_custom_call.1} parent=1 // pred_fallthru
      _
    // Predicated region
    $region10: #{tpu_custom_call.1} parent=1 // pred_check
      _
    $region11: #{tpu_custom_call.1} parent=1 // pred_check_branch
      %44 = sbr.rel (0) target = $region13
    $region12: #{tpu_custom_call.1} parent=1 // pred_region
      %s46 = ssub.s32 1024, 1024
      %47 = vsyncadd [#allocation6], %s46
      %s48 = sshll.u32 [#allocation7], 4
      %s49 = int_to_ptr.vmem [resolvable:$true] %s48
      %54 = dma.hbm_to_vmem [thread:$0]  %s2, 1024, %s49, [#allocation6], 64, 64, 4
    $region13: #{tpu_custom_call.1} parent=1 // pred_fallthru
      _
    // Predicated region
    $region14: #{tpu_custom_call.1} parent=1 // pred_check
      _
    $region15: #{tpu_custom_call.1} parent=1 // pred_check_branch
      %56 = sbr.rel (0) target = $region17
    $region16: #{tpu_custom_call.1} parent=1 // pred_region
      _
    $region17: #{tpu_custom_call.1} parent=1 // pred_fallthru
      _
    // Predicated region
    $region18: #{tpu_custom_call.1} parent=1 // pred_check
      _
    $region19: #{tpu_custom_call.1} parent=1 // pred_check_branch
      %58 = sbr.rel (0) target = $region21
    $region20: #{tpu_custom_call.1} parent=1 // pred_region
      %s60 = ssub.s32 1024, 1024
      %61 = vsyncadd [#allocation9], %s60
      %s62 = sshll.u32 [#allocation8], 4
      %s63 = int_to_ptr.vmem [resolvable:$true] %s62
      %68 = dma.hbm_to_vmem [thread:$0]  %s4, 1024, %s63, [#allocation9], 64, 64, 4
    $region21: #{tpu_custom_call.1} parent=1 // pred_fallthru
      _
    // Predicated region
    $region22: #{tpu_custom_call.1} parent=1 // pred_check
      _
    $region23: #{tpu_custom_call.1} parent=1 // pred_check_branch
      %70 = sbr.rel (0) target = $region25
    $region24: #{tpu_custom_call.1} parent=1 // pred_region
      _
    $region25: #{tpu_custom_call.1} parent=1 // pred_fallthru
      _
    // Predicated region
    $region26: #{tpu_custom_call.1} parent=1 // pred_check
      _
    $region27: #{tpu_custom_call.1} parent=1 // pred_check_branch
      %72 = sbr.rel (0) target = $region29
    $region28: #{tpu_custom_call.1} parent=1 // pred_region
      _
    $region29: #{tpu_custom_call.1} parent=1 // pred_fallthru
      _
    // Predicated region
    $region30: #{tpu_custom_call.1} parent=1 // pred_check
      _
    $region31: #{tpu_custom_call.1} parent=1 // pred_check_branch
      %74 = sbr.rel (0) target = $region33
    $region32: #{tpu_custom_call.1} parent=1 // pred_region
      _
    $region33: #{tpu_custom_call.1} parent=1 // pred_fallthru
      _
    // Predicated region
    $region34: #{tpu_custom_call.1} parent=1 // pred_check
      _
    $region35: #{tpu_custom_call.1} parent=1 // pred_check_branch
      %76 = sbr.rel (0) target = $region37
    $region36: #{tpu_custom_call.1} parent=1 // pred_region
      %s78 = ssub.s32 3072, 3072
      %79 = vsyncadd [#allocation9], %s78
      %s80 = sshll.u32 [#allocation10], 4
      %s81 = int_to_ptr.vmem [resolvable:$true] %s80
      %86 = dma.hbm_to_vmem [thread:$0]  %s8, 3072, %s81, [#allocation9], 64, 64, 4
    $region37: #{tpu_custom_call.1} parent=1 // pred_fallthru
      _
    // Predicated region
    $region38: #{tpu_custom_call.1} parent=1 // pred_check
      _
    $region39: #{tpu_custom_call.1} parent=1 // pred_check_branch
      %88 = sbr.rel (0) target = $region41
    $region40: #{tpu_custom_call.1} parent=1 // pred_region
      _
    $region41: #{tpu_custom_call.1} parent=1 // pred_fallthru
      _
    // Predicated region
    $region42: #{tpu_custom_call.1} parent=1 // pred_check
      _
    $region43: #{tpu_custom_call.1} parent=1 // pred_check_branch
      %90 = sbr.rel (0) target = $region45
    $region44: #{tpu_custom_call.1} parent=1 // pred_region
      %91 = dma.done [#allocation3], 256
    $region45: #{tpu_custom_call.1} parent=1 // pred_fallthru
      _
    // Predicated region
    $region46: #{tpu_custom_call.1} parent=1 // pred_check
      _
    $region47: #{tpu_custom_call.1} parent=1 // pred_check_branch
      %93 = sbr.rel (0) target = $region49
    $region48: #{tpu_custom_call.1} parent=1 // pred_region
      %94 = dma.done [#allocation6], 512
    $region49: #{tpu_custom_call.1} parent=1 // pred_fallthru
      _
    // Predicated region
    $region50: #{tpu_custom_call.1} parent=1 // pred_check
      _
    $region51: #{tpu_custom_call.1} parent=1 // pred_check_branch
      %96 = sbr.rel (0) target = $region53
    $region52: #{tpu_custom_call.1} parent=1 // pred_region
      %97 = dma.done [#allocation6], 1024
    $region53: #{tpu_custom_call.1} parent=1 // pred_fallthru
      _
    // Predicated region
    $region54: #{tpu_custom_call.1} parent=1 // pred_check
      _
    $region55: #{tpu_custom_call.1} parent=1 // pred_check_branch
      %99 = sbr.rel (0) target = $region57
    $region56: #{tpu_custom_call.1} parent=1 // pred_region
      %100 = dma.done [#allocation9], 1024
    $region57: #{tpu_custom_call.1} parent=1 // pred_fallthru
      _
    // Predicated region
    $region58: #{tpu_custom_call.1} parent=1 // pred_check
      _
    $region59: #{tpu_custom_call.1} parent=1 // pred_check_branch
      %102 = sbr.rel (0) target = $region61
    $region60: #{tpu_custom_call.1} parent=1 // pred_region
      %103 = dma.done [#allocation9], 3072
    $region61: #{tpu_custom_call.1} parent=1 // pred_fallthru
      _
    %v105 = vld [vmem:[#allocation2] sm:$0xf]
    %v106 = vld [vmem:[#allocation2 + $0x4] sm:$0xf]
    %v107 = vld [vmem:[#allocation2 + $0x8] sm:$0xf]
    %v108 = vld [vmem:[#allocation2 + $0xc] sm:$0xf]
    %v109 = vld [vmem:[#allocation5] sm:$0xff]
    %v110 = vld [vmem:[#allocation5 + $0x8] sm:$0xff]
    %v111 = vld [vmem:[#allocation5 + $0x10] sm:$0xff]
    %v112 = vld [vmem:[#allocation5 + $0x18] sm:$0xff]
    %v113 = vld [vmem:[#allocation7] sm:$0xf]
    %v114 = vld [vmem:[#allocation7 + $0x4] sm:$0xf]
    %v115 = vld [vmem:[#allocation7 + $0x8] sm:$0xf]
    %v116 = vld [vmem:[#allocation7 + $0xc] sm:$0xf]
    %v117 = vld [vmem:[#allocation7 + $0x10] sm:$0xf]
    %v118 = vld [vmem:[#allocation7 + $0x14] sm:$0xf]
    %v119 = vld [vmem:[#allocation7 + $0x18] sm:$0xf]
    %v120 = vld [vmem:[#allocation7 + $0x1c] sm:$0xf]
    %v121 = vld [vmem:[#allocation7 + $0x20] sm:$0xf]
    %v122 = vld [vmem:[#allocation7 + $0x24] sm:$0xf]
    %v123 = vld [vmem:[#allocation7 + $0x28] sm:$0xf]
    %v124 = vld [vmem:[#allocation7 + $0x2c] sm:$0xf]
    %v125 = vld [vmem:[#allocation7 + $0x30] sm:$0xf]
    %v126 = vld [vmem:[#allocation7 + $0x34] sm:$0xf]
    %v127 = vld [vmem:[#allocation7 + $0x38] sm:$0xf]
    %v128 = vld [vmem:[#allocation7 + $0x3c] sm:$0xf]
    %v129 = vld [vmem:[#allocation8] sm:$0xf]
    %v130 = vld [vmem:[#allocation8 + $0x4] sm:$0xf]
    %v131 = vld [vmem:[#allocation8 + $0x8] sm:$0xf]
    %v132 = vld [vmem:[#allocation8 + $0xc] sm:$0xf]
    %v133 = vld [vmem:[#allocation8 + $0x10] sm:$0xf]
    %v134 = vld [vmem:[#allocation8 + $0x14] sm:$0xf]
    %v135 = vld [vmem:[#allocation8 + $0x18] sm:$0xf]
    %v136 = vld [vmem:[#allocation8 + $0x1c] sm:$0xf]
    %v137 = vld [vmem:[#allocation8 + $0x20] sm:$0xf]
    %v138 = vld [vmem:[#allocation8 + $0x24] sm:$0xf]
    %v139 = vld [vmem:[#allocation8 + $0x28] sm:$0xf]
    %v140 = vld [vmem:[#allocation8 + $0x2c] sm:$0xf]
    %v141 = vld [vmem:[#allocation8 + $0x30] sm:$0xf]
    %v142 = vld [vmem:[#allocation8 + $0x34] sm:$0xf]
    %v143 = vld [vmem:[#allocation8 + $0x38] sm:$0xf]
    %v144 = vld [vmem:[#allocation8 + $0x3c] sm:$0xf]
    %v145 = vld [vmem:[#allocation10] sm:$0xf]
    %v146 = vld [vmem:[#allocation10 + $0x4] sm:$0xf]
    %v147 = vld [vmem:[#allocation10 + $0x8] sm:$0xf]
    %v148 = vld [vmem:[#allocation10 + $0xc] sm:$0xf]
    %v149 = vld [vmem:[#allocation10 + $0x10] sm:$0xf]
    %v150 = vld [vmem:[#allocation10 + $0x14] sm:$0xf]
    %v151 = vld [vmem:[#allocation10 + $0x18] sm:$0xf]
    %v152 = vld [vmem:[#allocation10 + $0x1c] sm:$0xf]
    %v153 = vld [vmem:[#allocation10 + $0x20] sm:$0xf]
    %v154 = vld [vmem:[#allocation10 + $0x24] sm:$0xf]
    %v155 = vld [vmem:[#allocation10 + $0x28] sm:$0xf]
    %v156 = vld [vmem:[#allocation10 + $0x2c] sm:$0xf]
    %v157 = vld [vmem:[#allocation10 + $0x30] sm:$0xf]
    %v158 = vld [vmem:[#allocation10 + $0x34] sm:$0xf]
    %v159 = vld [vmem:[#allocation10 + $0x38] sm:$0xf]
    %v160 = vld [vmem:[#allocation10 + $0x3c] sm:$0xf]
    %v161 = vld [vmem:[#allocation10 + $0x40] sm:$0xf]
    %v162 = vld [vmem:[#allocation10 + $0x44] sm:$0xf]
    %v163 = vld [vmem:[#allocation10 + $0x48] sm:$0xf]
    %v164 = vld [vmem:[#allocation10 + $0x4c] sm:$0xf]
    %v165 = vld [vmem:[#allocation10 + $0x50] sm:$0xf]
    %v166 = vld [vmem:[#allocation10 + $0x54] sm:$0xf]
    %v167 = vld [vmem:[#allocation10 + $0x58] sm:$0xf]
    %v168 = vld [vmem:[#allocation10 + $0x5c] sm:$0xf]
    %v169 = vld [vmem:[#allocation10 + $0x60] sm:$0xf]
    %v170 = vld [vmem:[#allocation10 + $0x64] sm:$0xf]
    %v171 = vld [vmem:[#allocation10 + $0x68] sm:$0xf]
    %v172 = vld [vmem:[#allocation10 + $0x6c] sm:$0xf]
    %v173 = vld [vmem:[#allocation10 + $0x70] sm:$0xf]
    %v174 = vld [vmem:[#allocation10 + $0x74] sm:$0xf]
    %v175 = vld [vmem:[#allocation10 + $0x78] sm:$0xf]
    %v176 = vld [vmem:[#allocation10 + $0x7c] sm:$0xf]
    %v177 = vld [vmem:[#allocation10 + $0x80] sm:$0xf]
    %v178 = vld [vmem:[#allocation10 + $0x84] sm:$0xf]
    %v179 = vld [vmem:[#allocation10 + $0x88] sm:$0xf]
    %v180 = vld [vmem:[#allocation10 + $0x8c] sm:$0xf]
    %v181 = vld [vmem:[#allocation10 + $0x90] sm:$0xf]
    %v182 = vld [vmem:[#allocation10 + $0x94] sm:$0xf]
    %v183 = vld [vmem:[#allocation10 + $0x98] sm:$0xf]
    %v184 = vld [vmem:[#allocation10 + $0x9c] sm:$0xf]
    %v185 = vld [vmem:[#allocation10 + $0xa0] sm:$0xf]
    %v186 = vld [vmem:[#allocation10 + $0xa4] sm:$0xf]
    %v187 = vld [vmem:[#allocation10 + $0xa8] sm:$0xf]
    %v188 = vld [vmem:[#allocation10 + $0xac] sm:$0xf]
    %v189 = vld [vmem:[#allocation10 + $0xb0] sm:$0xf]
    %v190 = vld [vmem:[#allocation10 + $0xb4] sm:$0xf]
    %v191 = vld [vmem:[#allocation10 + $0xb8] sm:$0xf]
    %v192 = vld [vmem:[#allocation10 + $0xbc] sm:$0xf]
    %v193 = vld [vmem:[%s3] sm:$0x1]
    %v194 = vld [vmem:[%s5] sm:$0x1]
    %v195 = vld [vmem:[%s9] sm:$0x1]
    %v196 = vld [vmem:[%s6] sm:$0x7]
    %v197 = vld [vmem:[%s7] sm:$0x7]
    %v198 = vpack.c.bf16 %v110, %v109
    %v199 = vpack.c.bf16 %v112, %v111
    %v216 = vunpack.c.l.b16 %v113
    %v217 = vunpack.c.l.b16 %v114
    %v218 = vunpack.c.l.b16 %v115
    %v219 = vunpack.c.l.b16 %v116
    %v220 = vunpack.c.l.b16 %v117
    %v221 = vunpack.c.l.b16 %v118
    %v222 = vunpack.c.l.b16 %v119
    %v223 = vunpack.c.l.b16 %v120
    %v224 = vunpack.c.l.b16 %v121
    %v225 = vunpack.c.l.b16 %v122
    %v226 = vunpack.c.l.b16 %v123
    %v227 = vunpack.c.l.b16 %v124
    %v228 = vunpack.c.l.b16 %v125
    %v229 = vunpack.c.l.b16 %v126
    %v230 = vunpack.c.l.b16 %v127
    %v231 = vunpack.c.l.b16 %v128
    %v232 = vpack.c.b16 %v217, %v216
    %v233 = vpack.c.b16 %v219, %v218
    %v234 = vpack.c.b16 %v221, %v220
    %v235 = vpack.c.b16 %v223, %v222
    %v236 = vpack.c.b16 %v225, %v224
    %v237 = vpack.c.b16 %v227, %v226
    %v238 = vpack.c.b16 %v229, %v228
    %v239 = vpack.c.b16 %v231, %v230
    %248 = vmatprep.subr.bf16.mxu0 0
    %249 = vmatpush1.bf16.msra.mxu0 %v239
    %250 = vmatprep.subr.bf16.mxu0 0
    %251 = vmatpush1.bf16.msra.mxu0 %v238
    %252 = vmatprep.subr.bf16.mxu0 0
    %253 = vmatpush1.bf16.msra.mxu0 %v237
    %254 = vmatprep.subr.bf16.mxu0 0
    %255 = vmatpush1.bf16.msra.mxu0 %v236
    %256 = vmatprep.subr.bf16.mxu0 0
    %257 = vmatpush1.bf16.msra.mxu0 %v235
    %258 = vmatprep.subr.bf16.mxu0 0
    %259 = vmatpush1.bf16.msra.mxu0 %v234
    %260 = vmatprep.subr.bf16.mxu0 0
    %261 = vmatpush1.bf16.msra.mxu0 %v233
    %262 = vmatprep.subr.bf16.mxu0 0
    %263 = vmatpush1.bf16.msra.mxu0 %v232
    %264 = vmatprep.subr.bf16.mxu0 0
    %265 = vmatpush2.bf16.msra.mxu0 0
    %266 = vmatprep.subr.bf16.mxu0 0
    %267 = vmatpush2.bf16.msra.mxu0 0
    %268 = vmatprep.subr.bf16.mxu0 0
    %269 = vmatpush2.bf16.msra.mxu0 0
    %270 = vmatprep.subr.bf16.mxu0 0
    %271 = vmatpush2.bf16.msra.mxu0 0
    %272 = vmatprep.subr.bf16.mxu0 0
    %273 = vmatpush2.bf16.msra.mxu0 0
    %274 = vmatprep.subr.bf16.mxu0 0
    %275 = vmatpush2.bf16.msra.mxu0 0
    %276 = vmatprep.subr.bf16.mxu0 0
    %277 = vmatpush2.bf16.msra.mxu0 0
    %278 = vmatprep.subr.bf16.mxu0 0
    %279 = vmatpush2.bf16.msra.mxu0 0
    %280 = vmatprep.mubr.bf16.mxu0 0
    %281 = vmatmul.mubr.bf16.gmra.mxu0 %v198
    %v282 = vpop.f32.mrf.mxu0
    %v283 = vadd.f32 0.0, %v282
    %v284 = vpop.f32.mrf.mxu0
    %v285 = vpop.f32.mrf.mxu0
    %v286 = vadd.f32 0.0, %v285
    %v287 = vpop.f32.mrf.mxu0
    %288 = vmatprep.mubr.bf16.mxu0 0
    %289 = vmatmul.mubr.bf16.gmra.mxu0 %v199
    %v290 = vpop.f32.mrf.mxu0
    %v291 = vadd.f32 0.0, %v290
    %v292 = vpop.f32.mrf.mxu0
    %v293 = vpop.f32.mrf.mxu0
    %v294 = vadd.f32 0.0, %v293
    %v295 = vpop.f32.mrf.mxu0
    %296 = vdwg.mxu0
    %v297 = vpack.c.bf16 %v286, %v283
    %v298 = vpack.c.bf16 %v294, %v291
    %v301 = vunpack.c.l.b16 %v105
    %v302 = vunpack.c.l.b16 %v106
    %v303 = vpack.c.b16 %v302, %v301
    %vm304 = vcmask 130048
    %v306 = vsel %vm304, %v303, 0
    %308 = vmatprep.subr.bf16.mxu0 0
    %309 = vmatpush1.bf16.msra.mxu0 0
    %310 = vmatprep.subr.bf16.mxu0 0
    %311 = vmatpush1.bf16.msra.mxu0 0
    %312 = vmatprep.subr.bf16.mxu0 0
    %313 = vmatpush1.bf16.msra.mxu0 0
    %314 = vmatprep.subr.bf16.mxu0 0
    %315 = vmatpush1.bf16.msra.mxu0 0
    %316 = vmatprep.subr.bf16.mxu0 0
    %317 = vmatpush1.bf16.msra.mxu0 0
    %318 = vmatprep.subr.bf16.mxu0 0
    %319 = vmatpush1.bf16.msra.mxu0 0
    %320 = vmatprep.subr.bf16.mxu0 0
    %321 = vmatpush1.bf16.msra.mxu0 0
    %322 = vmatprep.subr.bf16.mxu0 0
    %323 = vmatpush1.bf16.msra.mxu0 %v297
    %324 = vmatprep.subr.bf16.mxu0 0
    %325 = vmatpush2.bf16.msra.mxu0 0
    %326 = vmatprep.subr.bf16.mxu0 0
    %327 = vmatpush2.bf16.msra.mxu0 0
    %328 = vmatprep.subr.bf16.mxu0 0
    %329 = vmatpush2.bf16.msra.mxu0 0
    %330 = vmatprep.subr.bf16.mxu0 0
    %331 = vmatpush2.bf16.msra.mxu0 0
    %332 = vmatprep.subr.bf16.mxu0 0
    %333 = vmatpush2.bf16.msra.mxu0 0
    %334 = vmatprep.subr.bf16.mxu0 0
    %335 = vmatpush2.bf16.msra.mxu0 0
    %336 = vmatprep.subr.bf16.mxu0 0
    %337 = vmatpush2.bf16.msra.mxu0 0
    %338 = vmatprep.subr.bf16.mxu0 0
    %339 = vmatpush2.bf16.msra.mxu0 0
    %340 = vmatprep.mubr.bf16.mxu0 0
    %341 = vmatmul.mubr.bf16.gmra.mxu0 %v306
    %v342 = vpop.f32.mrf.mxu0
    %v343 = vadd.f32 0.0, %v342
    %v344 = vpop.f32.mrf.mxu0
    %v345 = vpop.f32.mrf.mxu0
    %v346 = vadd.f32 0.0, %v345
    %v347 = vpop.f32.mrf.mxu0
    %348 = vdwg.mxu0
    %v351 = vunpack.c.l.b16 %v107
    %v352 = vunpack.c.l.b16 %v108
    %v353 = vpack.c.b16 %v352, %v351
    %v355 = vsel %vm304, %v353, 0
    %357 = vmatprep.subr.bf16.mxu0 0
    %358 = vmatpush1.bf16.msra.mxu0 0
    %359 = vmatprep.subr.bf16.mxu0 0
    %360 = vmatpush1.bf16.msra.mxu0 0
    %361 = vmatprep.subr.bf16.mxu0 0
    %362 = vmatpush1.bf16.msra.mxu0 0
    %363 = vmatprep.subr.bf16.mxu0 0
    %364 = vmatpush1.bf16.msra.mxu0 0
    %365 = vmatprep.subr.bf16.mxu0 0
    %366 = vmatpush1.bf16.msra.mxu0 0
    %367 = vmatprep.subr.bf16.mxu0 0
    %368 = vmatpush1.bf16.msra.mxu0 0
    %369 = vmatprep.subr.bf16.mxu0 0
    %370 = vmatpush1.bf16.msra.mxu0 0
    %371 = vmatprep.subr.bf16.mxu0 0
    %372 = vmatpush1.bf16.msra.mxu0 %v298
    %373 = vmatprep.subr.bf16.mxu0 0
    %374 = vmatpush2.bf16.msra.mxu0 0
    %375 = vmatprep.subr.bf16.mxu0 0
    %376 = vmatpush2.bf16.msra.mxu0 0
    %377 = vmatprep.subr.bf16.mxu0 0
    %378 = vmatpush2.bf16.msra.mxu0 0
    %379 = vmatprep.subr.bf16.mxu0 0
    %380 = vmatpush2.bf16.msra.mxu0 0
    %381 = vmatprep.subr.bf16.mxu0 0
    %382 = vmatpush2.bf16.msra.mxu0 0
    %383 = vmatprep.subr.bf16.mxu0 0
    %384 = vmatpush2.bf16.msra.mxu0 0
    %385 = vmatprep.subr.bf16.mxu0 0
    %386 = vmatpush2.bf16.msra.mxu0 0
    %387 = vmatprep.subr.bf16.mxu0 0
    %388 = vmatpush2.bf16.msra.mxu0 0
    %389 = vmatprep.mubr.bf16.mxu0 0
    %390 = vmatmul.mubr.bf16.gmra.mxu0 %v355
    %v391 = vpop.f32.mrf.mxu0
    %v392 = vadd.f32 0.0, %v391
    %v393 = vpop.f32.mrf.mxu0
    %v394 = vpop.f32.mrf.mxu0
    %v395 = vadd.f32 0.0, %v394
    %v396 = vpop.f32.mrf.mxu0
    %397 = vdwg.mxu0
    %v399 = vlaneseq
    %v400 = vshrl.u32 %v399, 7
    %v401 = vsub.s32 0, %v400
    %v402 = vrot.slane %v193, %v401
    %v404 = vadd.f32 %v343, %v402
    %v405 = vadd.f32 %v346, %v402
    %v406 = vadd.f32 %v392, %v402
    %v407 = vadd.f32 %v395, %v402
    %v408 = vmax.f32 %v404, 0.0
    %v409 = vmax.f32 %v405, 0.0
    %v410 = vmax.f32 %v406, 0.0
    %v411 = vmax.f32 %v407, 0.0
    %v412 = vpack.c.bf16 %v409, %v408
    %v413 = vpack.c.bf16 %v411, %v410
    %v430 = vunpack.c.l.b16 %v129
    %v431 = vunpack.c.l.b16 %v130
    %v432 = vunpack.c.l.b16 %v131
    %v433 = vunpack.c.l.b16 %v132
    %v434 = vunpack.c.l.b16 %v133
    %v435 = vunpack.c.l.b16 %v134
    %v436 = vunpack.c.l.b16 %v135
    %v437 = vunpack.c.l.b16 %v136
    %v438 = vunpack.c.l.b16 %v137
    %v439 = vunpack.c.l.b16 %v138
    %v440 = vunpack.c.l.b16 %v139
    %v441 = vunpack.c.l.b16 %v140
    %v442 = vunpack.c.l.b16 %v141
    %v443 = vunpack.c.l.b16 %v142
    %v444 = vunpack.c.l.b16 %v143
    %v445 = vunpack.c.l.b16 %v144
    %v446 = vpack.c.b16 %v431, %v430
    %v447 = vpack.c.b16 %v433, %v432
    %v448 = vpack.c.b16 %v435, %v434
    %v449 = vpack.c.b16 %v437, %v436
    %v450 = vpack.c.b16 %v439, %v438
    %v451 = vpack.c.b16 %v441, %v440
    %v452 = vpack.c.b16 %v443, %v442
    %v453 = vpack.c.b16 %v445, %v444
    %462 = vmatprep.subr.bf16.mxu0 0
    %463 = vmatpush1.bf16.msra.mxu0 %v453
    %464 = vmatprep.subr.bf16.mxu0 0
    %465 = vmatpush1.bf16.msra.mxu0 %v452
    %466 = vmatprep.subr.bf16.mxu0 0
    %467 = vmatpush1.bf16.msra.mxu0 %v451
    %468 = vmatprep.subr.bf16.mxu0 0
    %469 = vmatpush1.bf16.msra.mxu0 %v450
    %470 = vmatprep.subr.bf16.mxu0 0
    %471 = vmatpush1.bf16.msra.mxu0 %v449
    %472 = vmatprep.subr.bf16.mxu0 0
    %473 = vmatpush1.bf16.msra.mxu0 %v448
    %474 = vmatprep.subr.bf16.mxu0 0
    %475 = vmatpush1.bf16.msra.mxu0 %v447
    %476 = vmatprep.subr.bf16.mxu0 0
    %477 = vmatpush1.bf16.msra.mxu0 %v446
    %478 = vmatprep.subr.bf16.mxu0 0
    %479 = vmatpush2.bf16.msra.mxu0 0
    %480 = vmatprep.subr.bf16.mxu0 0
    %481 = vmatpush2.bf16.msra.mxu0 0
    %482 = vmatprep.subr.bf16.mxu0 0
    %483 = vmatpush2.bf16.msra.mxu0 0
    %484 = vmatprep.subr.bf16.mxu0 0
    %485 = vmatpush2.bf16.msra.mxu0 0
    %486 = vmatprep.subr.bf16.mxu0 0
    %487 = vmatpush2.bf16.msra.mxu0 0
    %488 = vmatprep.subr.bf16.mxu0 0
    %489 = vmatpush2.bf16.msra.mxu0 0
    %490 = vmatprep.subr.bf16.mxu0 0
    %491 = vmatpush2.bf16.msra.mxu0 0
    %492 = vmatprep.subr.bf16.mxu0 0
    %493 = vmatpush2.bf16.msra.mxu0 0
    %494 = vmatprep.mubr.bf16.mxu0 0
    %495 = vmatmul.mubr.bf16.gmra.mxu0 %v412
    %v496 = vpop.f32.mrf.mxu0
    %v497 = vadd.f32 0.0, %v496
    %v498 = vpop.f32.mrf.mxu0
    %v499 = vpop.f32.mrf.mxu0
    %v500 = vadd.f32 0.0, %v499
    %v501 = vpop.f32.mrf.mxu0
    %502 = vmatprep.mubr.bf16.mxu0 0
    %503 = vmatmul.mubr.bf16.gmra.mxu0 %v413
    %v504 = vpop.f32.mrf.mxu0
    %v505 = vadd.f32 0.0, %v504
    %v506 = vpop.f32.mrf.mxu0
    %v507 = vpop.f32.mrf.mxu0
    %v508 = vadd.f32 0.0, %v507
    %v509 = vpop.f32.mrf.mxu0
    %510 = vdwg.mxu0
    %v511 = vpack.c.bf16 %v500, %v497
    %v512 = vpack.c.bf16 %v508, %v505
    %513 = vmatprep.subr.bf16.mxu0 0
    %514 = vmatpush1.bf16.msra.mxu0 0
    %515 = vmatprep.subr.bf16.mxu0 0
    %516 = vmatpush1.bf16.msra.mxu0 0
    %517 = vmatprep.subr.bf16.mxu0 0
    %518 = vmatpush1.bf16.msra.mxu0 0
    %519 = vmatprep.subr.bf16.mxu0 0
    %520 = vmatpush1.bf16.msra.mxu0 0
    %521 = vmatprep.subr.bf16.mxu0 0
    %522 = vmatpush1.bf16.msra.mxu0 0
    %523 = vmatprep.subr.bf16.mxu0 0
    %524 = vmatpush1.bf16.msra.mxu0 0
    %525 = vmatprep.subr.bf16.mxu0 0
    %526 = vmatpush1.bf16.msra.mxu0 0
    %527 = vmatprep.subr.bf16.mxu0 0
    %528 = vmatpush1.bf16.msra.mxu0 %v511
    %529 = vmatprep.subr.bf16.mxu0 0
    %530 = vmatpush2.bf16.msra.mxu0 0
    %531 = vmatprep.subr.bf16.mxu0 0
    %532 = vmatpush2.bf16.msra.mxu0 0
    %533 = vmatprep.subr.bf16.mxu0 0
    %534 = vmatpush2.bf16.msra.mxu0 0
    %535 = vmatprep.subr.bf16.mxu0 0
    %536 = vmatpush2.bf16.msra.mxu0 0
    %537 = vmatprep.subr.bf16.mxu0 0
    %538 = vmatpush2.bf16.msra.mxu0 0
    %539 = vmatprep.subr.bf16.mxu0 0
    %540 = vmatpush2.bf16.msra.mxu0 0
    %541 = vmatprep.subr.bf16.mxu0 0
    %542 = vmatpush2.bf16.msra.mxu0 0
    %543 = vmatprep.subr.bf16.mxu0 0
    %544 = vmatpush2.bf16.msra.mxu0 0
    %545 = vmatprep.mubr.bf16.mxu0 0
    %546 = vmatmul.mubr.bf16.gmra.mxu0 %v306
    %v547 = vpop.f32.mrf.mxu0
    %v548 = vadd.f32 0.0, %v547
    %v549 = vpop.f32.mrf.mxu0
    %v550 = vpop.f32.mrf.mxu0
    %v551 = vadd.f32 0.0, %v550
    %v552 = vpop.f32.mrf.mxu0
    %553 = vdwg.mxu0
    %554 = vmatprep.subr.bf16.mxu0 0
    %555 = vmatpush1.bf16.msra.mxu0 0
    %556 = vmatprep.subr.bf16.mxu0 0
    %557 = vmatpush1.bf16.msra.mxu0 0
    %558 = vmatprep.subr.bf16.mxu0 0
    %559 = vmatpush1.bf16.msra.mxu0 0
    %560 = vmatprep.subr.bf16.mxu0 0
    %561 = vmatpush1.bf16.msra.mxu0 0
    %562 = vmatprep.subr.bf16.mxu0 0
    %563 = vmatpush1.bf16.msra.mxu0 0
    %564 = vmatprep.subr.bf16.mxu0 0
    %565 = vmatpush1.bf16.msra.mxu0 0
    %566 = vmatprep.subr.bf16.mxu0 0
    %567 = vmatpush1.bf16.msra.mxu0 0
    %568 = vmatprep.subr.bf16.mxu0 0
    %569 = vmatpush1.bf16.msra.mxu0 %v512
    %570 = vmatprep.subr.bf16.mxu0 0
    %571 = vmatpush2.bf16.msra.mxu0 0
    %572 = vmatprep.subr.bf16.mxu0 0
    %573 = vmatpush2.bf16.msra.mxu0 0
    %574 = vmatprep.subr.bf16.mxu0 0
    %575 = vmatpush2.bf16.msra.mxu0 0
    %576 = vmatprep.subr.bf16.mxu0 0
    %577 = vmatpush2.bf16.msra.mxu0 0
    %578 = vmatprep.subr.bf16.mxu0 0
    %579 = vmatpush2.bf16.msra.mxu0 0
    %580 = vmatprep.subr.bf16.mxu0 0
    %581 = vmatpush2.bf16.msra.mxu0 0
    %582 = vmatprep.subr.bf16.mxu0 0
    %583 = vmatpush2.bf16.msra.mxu0 0
    %584 = vmatprep.subr.bf16.mxu0 0
    %585 = vmatpush2.bf16.msra.mxu0 0
    %586 = vmatprep.mubr.bf16.mxu0 0
    %587 = vmatmul.mubr.bf16.gmra.mxu0 %v355
    %v588 = vpop.f32.mrf.mxu0
    %v589 = vadd.f32 0.0, %v588
    %v590 = vpop.f32.mrf.mxu0
    %v591 = vpop.f32.mrf.mxu0
    %v592 = vadd.f32 0.0, %v591
    %v593 = vpop.f32.mrf.mxu0
    %594 = vdwg.mxu0
    %v596 = vlaneseq
    %v597 = vshrl.u32 %v596, 7
    %v598 = vsub.s32 0, %v597
    %v599 = vrot.slane %v194, %v598
    %v601 = vadd.f32 %v548, %v599
    %v602 = vadd.f32 %v551, %v599
    %v603 = vadd.f32 %v589, %v599
    %v604 = vadd.f32 %v592, %v599
    %v605 = vmax.f32 %v601, 0.0
    %v606 = vmax.f32 %v602, 0.0
    %v607 = vmax.f32 %v603, 0.0
    %v608 = vmax.f32 %v604, 0.0
    %v609 = vadd.f32 %v109, %v110
    %v610 = vadd.f32 %v609, %v111
    %v611 = vadd.f32 %v610, %v112
    %v612 = vrot.slane %v611, 4
    %v613 = vadd.f32 %v611, %v612
    %v614 = vrot.slane %v613, 2
    %v615 = vadd.f32 %v613, %v614
    %v616 = vrot.slane %v615, 1
    %v617 = vadd.f32 %v615, %v616
    %v618 = vadd.f32 %v408, %v409
    %v619 = vadd.f32 %v618, %v410
    %v620 = vadd.f32 %v619, %v411
    %v621 = vrot.slane %v620, 4
    %v622 = vadd.f32 %v620, %v621
    %v623 = vrot.slane %v622, 2
    %v624 = vadd.f32 %v622, %v623
    %v625 = vrot.slane %v624, 1
    %v626 = vadd.f32 %v624, %v625
    %v627 = vadd.f32 %v605, %v606
    %v628 = vadd.f32 %v627, %v607
    %v629 = vadd.f32 %v628, %v608
    %v630 = vrot.slane %v629, 4
    %v631 = vadd.f32 %v629, %v630
    %v632 = vrot.slane %v631, 2
    %v633 = vadd.f32 %v631, %v632
    %v634 = vrot.slane %v633, 1
    %v635 = vadd.f32 %v633, %v634
    %v636 = vmul.f32 %v617, 0.03125
    %v637 = vmul.f32 %v626, 0.03125
    %v638 = vmul.f32 %v635, 0.03125
    %v639 = vmul.f32 %v109, %v109
    %v640 = vmul.f32 %v408, %v408
    %v641 = vmul.f32 %v605, %v605
    %v642 = vmul.f32 %v110, %v110
    %v643 = vmul.f32 %v409, %v409
    %v644 = vmul.f32 %v606, %v606
    %v645 = vmul.f32 %v111, %v111
    %v646 = vmul.f32 %v410, %v410
    %v647 = vmul.f32 %v607, %v607
    %v648 = vmul.f32 %v112, %v112
    %v649 = vmul.f32 %v411, %v411
    %v650 = vmul.f32 %v608, %v608
    %v651 = vadd.f32 %v639, %v642
    %v652 = vadd.f32 %v651, %v645
    %v653 = vadd.f32 %v652, %v648
    %v654 = vrot.slane %v653, 4
    %v655 = vadd.f32 %v653, %v654
    %v656 = vrot.slane %v655, 2
    %v657 = vadd.f32 %v655, %v656
    %v658 = vrot.slane %v657, 1
    %v659 = vadd.f32 %v657, %v658
    %v660 = vadd.f32 %v640, %v643
    %v661 = vadd.f32 %v660, %v646
    %v662 = vadd.f32 %v661, %v649
    %v663 = vrot.slane %v662, 4
    %v664 = vadd.f32 %v662, %v663
    %v665 = vrot.slane %v664, 2
    %v666 = vadd.f32 %v664, %v665
    %v667 = vrot.slane %v666, 1
    %v668 = vadd.f32 %v666, %v667
    %v669 = vadd.f32 %v641, %v644
    %v670 = vadd.f32 %v669, %v647
    %v671 = vadd.f32 %v670, %v650
    %v672 = vrot.slane %v671, 4
    %v673 = vadd.f32 %v671, %v672
    %v674 = vrot.slane %v673, 2
    %v675 = vadd.f32 %v673, %v674
    %v676 = vrot.slane %v675, 1
    %v677 = vadd.f32 %v675, %v676
    %v678 = vmul.f32 %v659, 0.03125
    %v679 = vmul.f32 %v668, 0.03125
    %v680 = vmul.f32 %v677, 0.03125
    %v681 = vmul.f32 %v636, %v636
    %v682 = vmul.f32 %v637, %v637
    %v683 = vmul.f32 %v638, %v638
    %v684 = vsub.f32 %v678, %v681
    %v685 = vsub.f32 %v679, %v682
    %v686 = vsub.f32 %v680, %v683
    %v687 = vadd.f32 %v684, 1e-05
    %v688 = vadd.f32 %v685, 1e-05
    %v689 = vadd.f32 %v686, 1e-05
    %v690 = vrsqrt.pop %v687
    %v691 = vrsqrt.pop %v688
    %v692 = vrsqrt.pop %v689
    %v694 = vlaneseq
    %v695 = vshrl.u32 %v694, 7
    %v696 = vsub.s32 0, %v695
    %v697 = vrot.slane %v196, %v696
    %v698 = vlaneseq
    %v699 = vshrl.u32 %v698, 7
    %v700 = vsub.s32 1, %v699
    %v701 = vrot.slane %v196, %v700
    %v702 = vlaneseq
    %v703 = vshrl.u32 %v702, 7
    %v704 = vsub.s32 2, %v703
    %v705 = vrot.slane %v196, %v704
    %v709 = vmul.f32 %v690, %v697
    %v710 = vmul.f32 %v691, %v701
    %v711 = vmul.f32 %v692, %v705
    %v712 = vmul.f32 %v636, %v709
    %v713 = vmul.f32 %v637, %v710
    %v714 = vmul.f32 %v638, %v711
    %v718 = vcombine.low %v712, %v713
    %v720 = vunpack.c.l.s4 1966171168
    %v721 = vunpack.c.0.s8 %v720
    %v722 = vlaneseq
    %v723 = vshrl.u32 %v722, 7
    %v724 = vsub.s32 %v721, %v723
    %v725 = vrot.slane %v718, %v724
    %v727 = vunpack.c.l.s4 1966171168
    %v728 = vunpack.c.0.s8 %v727
    %v729 = vlaneseq
    %v730 = vshrl.u32 %v729, 7
    %v731 = vsub.s32 %v728, %v730
    %v732 = vrot.slane %v714, %v731
    %v733 = vcombine.low %v725, %v732
    %v735 = vunpack.c.l.s4 1966171168
    %v736 = vunpack.c.0.s8 %v735
    %v737 = vlaneseq
    %v738 = vshrl.u32 %v737, 7
    %v739 = vsub.s32 %v736, %v738
    %v740 = vrot.slane %v733, %v739
    %v742 = vsub.f32 %v197, %v740
    %v743 = vlaneseq
    %v744 = vshrl.u32 %v743, 7
    %v745 = vsub.s32 0, %v744
    %v746 = vrot.slane %v709, %v745
    %v747 = vlaneseq
    %v748 = vshrl.u32 %v747, 7
    %v749 = vsub.s32 0, %v748
    %v750 = vrot.slane %v710, %v749
    %v751 = vlaneseq
    %v752 = vshrl.u32 %v751, 7
    %v753 = vsub.s32 0, %v752
    %v754 = vrot.slane %v711, %v753
    %v755 = vmul.f32 %v109, %v746
    %v756 = vmul.f32 %v408, %v750
    %v757 = vmul.f32 %v605, %v754
    %v758 = vmul.f32 %v110, %v746
    %v759 = vmul.f32 %v409, %v750
    %v760 = vmul.f32 %v606, %v754
    %v761 = vmul.f32 %v111, %v746
    %v762 = vmul.f32 %v410, %v750
    %v763 = vmul.f32 %v607, %v754
    %v764 = vmul.f32 %v112, %v746
    %v765 = vmul.f32 %v411, %v750
    %v766 = vmul.f32 %v608, %v754
    %v767 = vpack.c.bf16 %v758, %v755
    %v768 = vpack.c.bf16 %v759, %v756
    %v769 = vpack.c.bf16 %v760, %v757
    %v770 = vpack.c.bf16 %v764, %v761
    %v771 = vpack.c.bf16 %v765, %v762
    %v772 = vpack.c.bf16 %v766, %v763
    %v774 = vlaneseq
    %v775 = vshrl.u32 %v774, 7
    %v776 = vsub.s32 0, %v775
    %v777 = vrot.slane %v742, %v776
    %v778 = vlaneseq
    %v779 = vshrl.u32 %v778, 7
    %v780 = vsub.s32 1, %v779
    %v781 = vrot.slane %v742, %v780
    %v782 = vlaneseq
    %v783 = vshrl.u32 %v782, 7
    %v784 = vsub.s32 2, %v783
    %v785 = vrot.slane %v742, %v784
    %v789 = vpack.c.bf16 %v777, %v777
    %v790 = vpack.c.bf16 %v781, %v781
    %v791 = vpack.c.bf16 %v785, %v785
    %v840 = vunpack.c.l.b16 %v145
    %v841 = vunpack.c.l.b16 %v146
    %v842 = vunpack.c.l.b16 %v147
    %v843 = vunpack.c.l.b16 %v148
    %v844 = vunpack.c.l.b16 %v149
    %v845 = vunpack.c.l.b16 %v150
    %v846 = vunpack.c.l.b16 %v151
    %v847 = vunpack.c.l.b16 %v152
    %v848 = vunpack.c.l.b16 %v153
    %v849 = vunpack.c.l.b16 %v154
    %v850 = vunpack.c.l.b16 %v155
    %v851 = vunpack.c.l.b16 %v156
    %v852 = vunpack.c.l.b16 %v157
    %v853 = vunpack.c.l.b16 %v158
    %v854 = vunpack.c.l.b16 %v159
    %v855 = vunpack.c.l.b16 %v160
    %v856 = vunpack.c.l.b16 %v161
    %v857 = vunpack.c.l.b16 %v162
    %v858 = vunpack.c.l.b16 %v163
    %v859 = vunpack.c.l.b16 %v164
    %v860 = vunpack.c.l.b16 %v165
    %v861 = vunpack.c.l.b16 %v166
    %v862 = vunpack.c.l.b16 %v167
    %v863 = vunpack.c.l.b16 %v168
    %v864 = vunpack.c.l.b16 %v169
    %v865 = vunpack.c.l.b16 %v170
    %v866 = vunpack.c.l.b16 %v171
    %v867 = vunpack.c.l.b16 %v172
    %v868 = vunpack.c.l.b16 %v173
    %v869 = vunpack.c.l.b16 %v174
    %v870 = vunpack.c.l.b16 %v175
    %v871 = vunpack.c.l.b16 %v176
    %v872 = vunpack.c.l.b16 %v177
    %v873 = vunpack.c.l.b16 %v178
    %v874 = vunpack.c.l.b16 %v179
    %v875 = vunpack.c.l.b16 %v180
    %v876 = vunpack.c.l.b16 %v181
    %v877 = vunpack.c.l.b16 %v182
    %v878 = vunpack.c.l.b16 %v183
    %v879 = vunpack.c.l.b16 %v184
    %v880 = vunpack.c.l.b16 %v185
    %v881 = vunpack.c.l.b16 %v186
    %v882 = vunpack.c.l.b16 %v187
    %v883 = vunpack.c.l.b16 %v188
    %v884 = vunpack.c.l.b16 %v189
    %v885 = vunpack.c.l.b16 %v190
    %v886 = vunpack.c.l.b16 %v191
    %v887 = vunpack.c.l.b16 %v192
    %v888 = vpack.c.b16 %v841, %v840
    %v889 = vpack.c.b16 %v843, %v842
    %v890 = vpack.c.b16 %v845, %v844
    %v891 = vpack.c.b16 %v847, %v846
    %v892 = vpack.c.b16 %v849, %v848
    %v893 = vpack.c.b16 %v851, %v850
    %v894 = vpack.c.b16 %v853, %v852
    %v895 = vpack.c.b16 %v855, %v854
    %v896 = vpack.c.b16 %v857, %v856
    %v897 = vpack.c.b16 %v859, %v858
    %v898 = vpack.c.b16 %v861, %v860
    %v899 = vpack.c.b16 %v863, %v862
    %v900 = vpack.c.b16 %v865, %v864
    %v901 = vpack.c.b16 %v867, %v866
    %v902 = vpack.c.b16 %v869, %v868
    %v903 = vpack.c.b16 %v871, %v870
    %v904 = vpack.c.b16 %v873, %v872
    %v905 = vpack.c.b16 %v875, %v874
    %v906 = vpack.c.b16 %v877, %v876
    %v907 = vpack.c.b16 %v879, %v878
    %v908 = vpack.c.b16 %v881, %v880
    %v909 = vpack.c.b16 %v883, %v882
    %v910 = vpack.c.b16 %v885, %v884
    %v911 = vpack.c.b16 %v887, %v886
    %936 = vmatprep.subr.bf16.mxu0 0
    %937 = vmatpush1.bf16.msra.mxu0 %v895
    %938 = vmatprep.subr.bf16.mxu0 0
    %939 = vmatpush1.bf16.msra.mxu0 %v894
    %940 = vmatprep.subr.bf16.mxu0 0
    %941 = vmatpush1.bf16.msra.mxu0 %v893
    %942 = vmatprep.subr.bf16.mxu0 0
    %943 = vmatpush1.bf16.msra.mxu0 %v892
    %944 = vmatprep.subr.bf16.mxu0 0
    %945 = vmatpush1.bf16.msra.mxu0 %v891
    %946 = vmatprep.subr.bf16.mxu0 0
    %947 = vmatpush1.bf16.msra.mxu0 %v890
    %948 = vmatprep.subr.bf16.mxu0 0
    %949 = vmatpush1.bf16.msra.mxu0 %v889
    %950 = vmatprep.subr.bf16.mxu0 0
    %951 = vmatpush1.bf16.msra.mxu0 %v888
    %952 = vmatprep.subr.bf16.mxu0 0
    %953 = vmatpush2.bf16.msra.mxu0 %v903
    %954 = vmatprep.subr.bf16.mxu0 0
    %955 = vmatpush2.bf16.msra.mxu0 %v902
    %956 = vmatprep.subr.bf16.mxu0 0
    %957 = vmatpush2.bf16.msra.mxu0 %v901
    %958 = vmatprep.subr.bf16.mxu0 0
    %959 = vmatpush2.bf16.msra.mxu0 %v900
    %960 = vmatprep.subr.bf16.mxu0 0
    %961 = vmatpush2.bf16.msra.mxu0 %v899
    %962 = vmatprep.subr.bf16.mxu0 0
    %963 = vmatpush2.bf16.msra.mxu0 %v898
    %964 = vmatprep.subr.bf16.mxu0 0
    %965 = vmatpush2.bf16.msra.mxu0 %v897
    %966 = vmatprep.subr.bf16.mxu0 0
    %967 = vmatpush2.bf16.msra.mxu0 %v896
    %968 = vmatprep.mubr.bf16.mxu0 %v790
    %969 = vmatmul.mubr.bf16.gmra.mxu0 %v789
    %v970 = vpop.f32.mrf.mxu0
    %v971 = vadd.f32 %v195, %v970
    %v972 = vpop.f32.mrf.mxu0
    %v973 = vpop.f32.mrf.mxu0
    %v974 = vpop.f32.mrf.mxu0
    %975 = vdwg.mxu0
    %976 = vmatprep.subr.bf16.mxu0 0
    %977 = vmatpush1.bf16.msra.mxu0 %v911
    %978 = vmatprep.subr.bf16.mxu0 0
    %979 = vmatpush1.bf16.msra.mxu0 %v910
    %980 = vmatprep.subr.bf16.mxu0 0
    %981 = vmatpush1.bf16.msra.mxu0 %v909
    %982 = vmatprep.subr.bf16.mxu0 0
    %983 = vmatpush1.bf16.msra.mxu0 %v908
    %984 = vmatprep.subr.bf16.mxu0 0
    %985 = vmatpush1.bf16.msra.mxu0 %v907
    %986 = vmatprep.subr.bf16.mxu0 0
    %987 = vmatpush1.bf16.msra.mxu0 %v906
    %988 = vmatprep.subr.bf16.mxu0 0
    %989 = vmatpush1.bf16.msra.mxu0 %v905
    %990 = vmatprep.subr.bf16.mxu0 0
    %991 = vmatpush1.bf16.msra.mxu0 %v904
    %992 = vmatprep.subr.bf16.mxu0 0
    %993 = vmatpush2.bf16.msra.mxu0 0
    %994 = vmatprep.subr.bf16.mxu0 0
    %995 = vmatpush2.bf16.msra.mxu0 0
    %996 = vmatprep.subr.bf16.mxu0 0
    %997 = vmatpush2.bf16.msra.mxu0 0
    %998 = vmatprep.subr.bf16.mxu0 0
    %999 = vmatpush2.bf16.msra.mxu0 0
    %1000 = vmatprep.subr.bf16.mxu0 0
    %1001 = vmatpush2.bf16.msra.mxu0 0
    %1002 = vmatprep.subr.bf16.mxu0 0
    %1003 = vmatpush2.bf16.msra.mxu0 0
    %1004 = vmatprep.subr.bf16.mxu0 0
    %1005 = vmatpush2.bf16.msra.mxu0 0
    %1006 = vmatprep.subr.bf16.mxu0 0
    %1007 = vmatpush2.bf16.msra.mxu0 0
    %1008 = vmatprep.mubr.bf16.mxu0 0
    %1009 = vmatmul.mubr.bf16.gmra.mxu0 %v791
    %v1010 = vpop.f32.mrf.mxu0
    %v1011 = vadd.f32 %v971, %v1010
    %v1012 = vpop.f32.mrf.mxu0
    %v1013 = vpop.f32.mrf.mxu0
    %v1014 = vpop.f32.mrf.mxu0
    %1015 = vdwg.mxu0
    %v1016 = vlaneseq
    %v1017 = vshrl.u32 %v1016, 7
    %v1018 = vsub.s32 0, %v1017
    %v1019 = vrot.slane %v1011, %v1018
    %1020 = vmatprep.subr.bf16.mxu0 0
    %1021 = vmatpush1.bf16.msra.mxu0 %v895
    %1022 = vmatprep.subr.bf16.mxu0 0
    %1023 = vmatpush1.bf16.msra.mxu0 %v894
    %1024 = vmatprep.subr.bf16.mxu0 0
    %1025 = vmatpush1.bf16.msra.mxu0 %v893
    %1026 = vmatprep.subr.bf16.mxu0 0
    %1027 = vmatpush1.bf16.msra.mxu0 %v892
    %1028 = vmatprep.subr.bf16.mxu0 0
    %1029 = vmatpush1.bf16.msra.mxu0 %v891
    %1030 = vmatprep.subr.bf16.mxu0 0
    %1031 = vmatpush1.bf16.msra.mxu0 %v890
    %1032 = vmatprep.subr.bf16.mxu0 0
    %1033 = vmatpush1.bf16.msra.mxu0 %v889
    %1034 = vmatprep.subr.bf16.mxu0 0
    %1035 = vmatpush1.bf16.msra.mxu0 %v888
    %1036 = vmatprep.subr.bf16.mxu0 0
    %1037 = vmatpush2.bf16.msra.mxu0 %v903
    %1038 = vmatprep.subr.bf16.mxu0 0
    %1039 = vmatpush2.bf16.msra.mxu0 %v902
    %1040 = vmatprep.subr.bf16.mxu0 0
    %1041 = vmatpush2.bf16.msra.mxu0 %v901
    %1042 = vmatprep.subr.bf16.mxu0 0
    %1043 = vmatpush2.bf16.msra.mxu0 %v900
    %1044 = vmatprep.subr.bf16.mxu0 0
    %1045 = vmatpush2.bf16.msra.mxu0 %v899
    %1046 = vmatprep.subr.bf16.mxu0 0
    %1047 = vmatpush2.bf16.msra.mxu0 %v898
    %1048 = vmatprep.subr.bf16.mxu0 0
    %1049 = vmatpush2.bf16.msra.mxu0 %v897
    %1050 = vmatprep.subr.bf16.mxu0 0
    %1051 = vmatpush2.bf16.msra.mxu0 %v896
    %1052 = vmatprep.mubr.bf16.mxu0 %v768
    %1053 = vmatmul.mubr.bf16.gmra.mxu0 %v767
    %v1054 = vpop.f32.mrf.mxu0
    %v1055 = vadd.f32 %v1019, %v1054
    %v1056 = vpop.f32.mrf.mxu0
    %v1057 = vpop.f32.mrf.mxu0
    %v1058 = vadd.f32 %v1019, %v1057
    %v1059 = vpop.f32.mrf.mxu0
    %1060 = vmatprep.mubr.bf16.mxu0 %v771
    %1061 = vmatmul.mubr.bf16.gmra.mxu0 %v770
    %v1062 = vpop.f32.mrf.mxu0
    %v1063 = vadd.f32 %v1019, %v1062
    %v1064 = vpop.f32.mrf.mxu0
    %v1065 = vpop.f32.mrf.mxu0
    %v1066 = vadd.f32 %v1019, %v1065
    %v1067 = vpop.f32.mrf.mxu0
    %1068 = vdwg.mxu0
    %1069 = vmatprep.subr.bf16.mxu0 0
    %1070 = vmatpush1.bf16.msra.mxu0 %v911
    %1071 = vmatprep.subr.bf16.mxu0 0
    %1072 = vmatpush1.bf16.msra.mxu0 %v910
    %1073 = vmatprep.subr.bf16.mxu0 0
    %1074 = vmatpush1.bf16.msra.mxu0 %v909
    %1075 = vmatprep.subr.bf16.mxu0 0
    %1076 = vmatpush1.bf16.msra.mxu0 %v908
    %1077 = vmatprep.subr.bf16.mxu0 0
    %1078 = vmatpush1.bf16.msra.mxu0 %v907
    %1079 = vmatprep.subr.bf16.mxu0 0
    %1080 = vmatpush1.bf16.msra.mxu0 %v906
    %1081 = vmatprep.subr.bf16.mxu0 0
    %1082 = vmatpush1.bf16.msra.mxu0 %v905
    %1083 = vmatprep.subr.bf16.mxu0 0
    %1084 = vmatpush1.bf16.msra.mxu0 %v904
    %1085 = vmatprep.subr.bf16.mxu0 0
    %1086 = vmatpush2.bf16.msra.mxu0 0
    %1087 = vmatprep.subr.bf16.mxu0 0
    %1088 = vmatpush2.bf16.msra.mxu0 0
    %1089 = vmatprep.subr.bf16.mxu0 0
    %1090 = vmatpush2.bf16.msra.mxu0 0
    %1091 = vmatprep.subr.bf16.mxu0 0
    %1092 = vmatpush2.bf16.msra.mxu0 0
    %1093 = vmatprep.subr.bf16.mxu0 0
    %1094 = vmatpush2.bf16.msra.mxu0 0
    %1095 = vmatprep.subr.bf16.mxu0 0
    %1096 = vmatpush2.bf16.msra.mxu0 0
    %1097 = vmatprep.subr.bf16.mxu0 0
    %1098 = vmatpush2.bf16.msra.mxu0 0
    %1099 = vmatprep.subr.bf16.mxu0 0
    %1100 = vmatpush2.bf16.msra.mxu0 0
    %1101 = vmatprep.mubr.bf16.mxu0 0
    %1102 = vmatmul.mubr.bf16.gmra.mxu0 %v769
    %v1103 = vpop.f32.mrf.mxu0
    %v1104 = vadd.f32 %v1055, %v1103
    %v1105 = vpop.f32.mrf.mxu0
    %v1106 = vpop.f32.mrf.mxu0
    %v1107 = vadd.f32 %v1058, %v1106
    %v1108 = vpop.f32.mrf.mxu0
    %1109 = vmatprep.mubr.bf16.mxu0 0
    %1110 = vmatmul.mubr.bf16.gmra.mxu0 %v772
    %v1111 = vpop.f32.mrf.mxu0
    %v1112 = vadd.f32 %v1063, %v1111
    %v1113 = vpop.f32.mrf.mxu0
    %v1114 = vpop.f32.mrf.mxu0
    %v1115 = vadd.f32 %v1066, %v1114
    %v1116 = vpop.f32.mrf.mxu0
    %1117 = vdwg.mxu0
    %1118 = vst [vmem:[#allocation11] sm:$0xff] %v1104
    %1119 = vst [vmem:[#allocation11 + $0x8] sm:$0xff] %v1107
    %1120 = vst [vmem:[#allocation11 + $0x10] sm:$0xff] %v1112
    %1121 = vst [vmem:[#allocation11 + $0x18] sm:$0xff] %v1115
    // Predicated region
    $region62: #{tpu_custom_call.1} parent=1 // pred_check
      _
    $region63: #{tpu_custom_call.1} parent=1 // pred_check_branch
      %1123 = sbr.rel (0) target = $region65
    $region64: #{tpu_custom_call.1} parent=1 // pred_region
      %s1125 = ssub.s32 512, 512
      %1126 = vsyncadd [#allocation4], %s1125
      %s1127 = sshll.u32 [#allocation11], 4
      %s1128 = int_to_ptr.vmem [resolvable:$true] %s1127
      %1133 = dma.vmem_to_hbm [thread:$0]  %s1128, 512, %s10, [#allocation4], 128, 128, 8
    $region65: #{tpu_custom_call.1} parent=1 // pred_fallthru
      _
    // Predicated region
    $region66: #{tpu_custom_call.1} parent=1 // pred_check
      _
    $region67: #{tpu_custom_call.1} parent=1 // pred_check_branch
      %1135 = sbr.rel (0) target = $region69
    $region68: #{tpu_custom_call.1} parent=1 // pred_region
      %1136 = dma.done [#allocation4], 512
    $region69: #{tpu_custom_call.1} parent=1 // pred_fallthru
      _
    %1137 = vsyncpa [#allocation3], 1
    %1138 = vsyncpa [#allocation6], 1
    %1139 = vsyncpa [#allocation9], 1
    %1140 = vsyncpa [#allocation4], 1

</llo_original>
